<compile_context>
chip_gen: v5e
topology: v5e:2x2
jax: 0.10.0
libtpu: 0.0.40
codegen_flags: <defaults>
</compile_context>

<pallas_src>
import jax
import jax.numpy as jnp
from jax.experimental import pallas as pl
from jax.experimental.pallas import tpu as pltpu

H1, H2 = 400, 300          # true hidden sizes (PyTorch module)
H1_PAD, H2_PAD = 512, 384  # lane-padded (multiples of 128)
LANE = 128                 # batch tile granularity (lane width)


def _round_up(x, m):
    return ((x + m - 1) // m) * m


def critic_kernel(x_ref, w1_ref, b1_ref, w2_ref, b2_ref, w3_ref, b3_ref, o_ref):
    # x_ref: (D_pad, BM) bf16 — state||action (zero-padded), batch on lanes.
    # Layer 1: single MXU dot, f32 accumulation, f32 bias + ReLU.
    h1 = jnp.dot(w1_ref[...], x_ref[...], preferred_element_type=jnp.float32)
    h1 = jnp.maximum(h1 + b1_ref[...], 0.0)                       # (512, BM) f32

    # Layer 2: bf16 MXU dot, f32 accumulate / bias / ReLU.
    h2 = jnp.dot(w2_ref[...], h1.astype(jnp.bfloat16),
                 preferred_element_type=jnp.float32)
    h2 = jnp.maximum(h2 + b2_ref[...], 0.0)                       # (384, BM) f32

    # Layer 3: f32 MXU dot (K-reduction on MXU, no cross-lane XLU reduce).
    q = jnp.dot(w3_ref[...], h2, preferred_element_type=jnp.float32)
    o_ref[...] = q + b3_ref[...]                                  # (1, BM) lane-dense


def prepare_critic_params(params, state_dim, action_dim):
    """One-time prep: pad to lane multiples, transpose to (out, in), cast MXU
    operands to bf16.  Hoisted out of the per-call path (perf review)."""
    w1, b1, w2, b2, w3, b3 = params        # (in, out) layout, f32
    D = state_dim + action_dim
    D_pad = _round_up(D, 16)               # bf16 sublane packing

    w1t = (jnp.zeros((H1_PAD, D_pad), jnp.float32)
           .at[:H1, :D].set(w1.T).astype(jnp.bfloat16))           # (512, D_pad)
    b1c = jnp.zeros((H1_PAD, 1), jnp.float32).at[:H1, 0].set(b1.reshape(-1))
    w2t = (jnp.zeros((H2_PAD, H1_PAD), jnp.float32)
           .at[:H2, :H1].set(w2.T).astype(jnp.bfloat16))          # (384, 512)
    b2c = jnp.zeros((H2_PAD, 1), jnp.float32).at[:H2, 0].set(b2.reshape(-1))
    w3r = jnp.zeros((1, H2_PAD), jnp.float32).at[0, :H2].set(w3.reshape(-1))
    b3s = jnp.asarray(b3, jnp.float32).reshape(1, 1)
    return (w1t, b1c, w2t, b2c, w3r, b3s)


def critic_forward(state, action, prepped_params, *, block_batch=1024):
    """q = l3(relu(l2(relu(l1(cat([state, action], 1)))))) — returns (B, 1) f32."""
    w1t, b1c, w2t, b2c, w3r, b3s = prepped_params
    B, state_dim = state.shape
    action_dim = action.shape[1]
    D = state_dim + action_dim
    D_pad = w1t.shape[1]

    # ---- Batch tiling: tiles are multiples of 128 lanes; prefer >= 2 grid
    # steps (when the batch allows it) so v7x megacore can split them. ----
    n_units = pl.cdiv(B, LANE)                         # 128-row units
    max_units_per_tile = max(1, block_batch // LANE)
    steps = pl.cdiv(n_units, max_units_per_tile)
    if n_units >= 2:
        steps = max(steps, 2)
    units_per_tile = pl.cdiv(n_units, steps)
    BM = units_per_tile * LANE
    steps = pl.cdiv(n_units, units_per_tile)
    B_pad = steps * BM

    # ---- Build the lane-major (transposed) input: batch on lanes. ----
    x = jnp.concatenate([state, action], axis=1)                    # (B, D) f32
    x = jnp.pad(x, ((0, B_pad - B), (0, D_pad - D))).astype(jnp.bfloat16)
    xt = x.T                                                        # (D_pad, B_pad)

    cost = pl.CostEstimate(
        flops=2 * B_pad * (D_pad * H1_PAD + H1_PAD * H2_PAD + H2_PAD),
        transcendentals=0,
        bytes_accessed=(w1t.size + w2t.size + xt.size) * 2
                       + (b1c.size + b2c.size + w3r.size + b3s.size + B_pad) * 4,
    )

    qt = pl.pallas_call(
        critic_kernel,
        out_shape=jax.ShapeDtypeStruct((1, B_pad), jnp.float32),
        grid_spec=pltpu.PrefetchScalarGridSpec(
            num_scalar_prefetch=0,
            grid=(steps,),
            in_specs=[
                pl.BlockSpec((D_pad, BM), lambda i: (0, i)),       # xT batch tile
                pl.BlockSpec((H1_PAD, D_pad), lambda i: (0, 0)),   # W1^T (resident)
                pl.BlockSpec((H1_PAD, 1), lambda i: (0, 0)),       # b1
                pl.BlockSpec((H2_PAD, H1_PAD), lambda i: (0, 0)),  # W2^T (resident)
                pl.BlockSpec((H2_PAD, 1), lambda i: (0, 0)),       # b2
                pl.BlockSpec((1, H2_PAD), lambda i: (0, 0)),       # w3 row (f32)
                pl.BlockSpec((1, 1), lambda i: (0, 0)),            # b3
            ],
            out_specs=pl.BlockSpec((1, BM), lambda i: (0, i)),     # lane-dense q row
        ),
        compiler_params=pltpu.CompilerParams(
            dimension_semantics=("parallel",),
        ),
        cost_estimate=cost,
    )(xt, w1t, b1c, w2t, b2c, w3r, b3s)

    return qt[0, :B].reshape(B, 1)


def init_critic_params(key, state_dim, action_dim):
    """Deterministic init mimicking nn.Linear's U(-1/sqrt(fan_in), 1/sqrt(fan_in))."""
    dims = [(state_dim + action_dim, H1), (H1, H2), (H2, 1)]
    params = []
    for (fan_in, fan_out) in dims:
        key, kw, kb = jax.random.split(key, 3)
        bound = 1.0 / jnp.sqrt(jnp.float32(fan_in))
        w = jax.random.uniform(kw, (fan_in, fan_out), jnp.float32, -bound, bound)
        b = jax.random.uniform(kb, (1, fan_out), jnp.float32, -bound, bound)
        params.extend([w, b])
    return tuple(params)


if __name__ == "__main__":
    state_dim, action_dim, batch = 8, 4, 2

    key = jax.random.PRNGKey(0)
    key, ks, ka = jax.random.split(key, 3)
    state = jax.random.normal(ks, (batch, state_dim), jnp.float32)
    action = jax.random.normal(ka, (batch, action_dim), jnp.float32)

    params = init_critic_params(key, state_dim, action_dim)
    prepped = prepare_critic_params(params, state_dim, action_dim)  # once per update

    q = critic_forward(state, action, prepped)
    q = jax.block_until_ready(q)

    # Pure-JAX reference with the same bf16 quantization points as the kernel.
    w1, b1, w2, b2, w3, b3 = params
    x_q = (jnp.concatenate([state, action], axis=1)
           .astype(jnp.bfloat16).astype(jnp.float32))
    w1_q = w1.astype(jnp.bfloat16).astype(jnp.float32)
    w2_q = w2.astype(jnp.bfloat16).astype(jnp.float32)
    h1 = jnp.maximum(x_q @ w1_q + b1, 0.0)
    h1_q = h1.astype(jnp.bfloat16).astype(jnp.float32)
    h2 = jnp.maximum(h1_q @ w2_q + b2, 0.0)
    ref = h2 @ w3 + b3

    assert q.shape == (batch, 1)
    assert jnp.allclose(q, ref, atol=2e-3, rtol=2e-3), (q, ref)

    print("KERNEL_OK")
</pallas_src>

<mosaic_0001>
module attributes {stable_mosaic.version = 11 : i64} {
  func.func @critic_kernel(%arg0: i32, %arg1: memref<16x128xbf16, #tpu.memory_space<vmem>>, %arg2: memref<512x16xbf16, #tpu.memory_space<vmem>>, %arg3: memref<512x1xf32, #tpu.memory_space<vmem>>, %arg4: memref<384x512xbf16, #tpu.memory_space<vmem>>, %arg5: memref<384x1xf32, #tpu.memory_space<vmem>>, %arg6: memref<1x384xf32, #tpu.memory_space<vmem>>, %arg7: memref<1x1xf32, #tpu.memory_space<vmem>>, %arg8: memref<1x128xf32, #tpu.memory_space<vmem>>) attributes {dimension_semantics = [#tpu.dimension_semantics<parallel>], iteration_bounds = array<i64: 1>, scalar_prefetch = 0 : i64, scratch_operands = 0 : i64, tpu.core_type = #tpu.core_type<tc>, window_params = [{transform_indices = @transform_0, window_bounds = array<i64: 16, 128>}, {pipeline_mode = #tpu.pipeline_mode<synchronous>, transform_indices = @transform_1, window_bounds = array<i64: 512, 16>}, {pipeline_mode = #tpu.pipeline_mode<synchronous>, transform_indices = @transform_2, window_bounds = array<i64: 512, 1>}, {pipeline_mode = #tpu.pipeline_mode<synchronous>, transform_indices = @transform_3, window_bounds = array<i64: 384, 512>}, {pipeline_mode = #tpu.pipeline_mode<synchronous>, transform_indices = @transform_4, window_bounds = array<i64: 384, 1>}, {pipeline_mode = #tpu.pipeline_mode<synchronous>, transform_indices = @transform_5, window_bounds = array<i64: 1, 384>}, {pipeline_mode = #tpu.pipeline_mode<synchronous>, transform_indices = @transform_6, window_bounds = array<i64: 1, 1>}, {transform_indices = @transform_7, window_bounds = array<i64: 1, 128>}]} {
    %c0 = arith.constant 0 : index
    %c0_0 = arith.constant 0 : index
    %0 = vector.load %arg2[%c0, %c0_0] : memref<512x16xbf16, #tpu.memory_space<vmem>>, vector<512x16xbf16>
    %c0_1 = arith.constant 0 : index
    %c0_2 = arith.constant 0 : index
    %1 = vector.load %arg1[%c0_1, %c0_2] : memref<16x128xbf16, #tpu.memory_space<vmem>>, vector<16x128xbf16>
    %cst = arith.constant dense<0.000000e+00> : vector<512x128xf32>
    %2 = tpu.matmul %0, %1, %cst {dimension_numbers = #tpu.dot_dimension_numbers<[1], [0], [0], [1], [0, 0, 1, 1], [], []>} : vector<512x16xbf16>, vector<16x128xbf16>, vector<512x128xf32> -> vector<512x128xf32>
    %c0_3 = arith.constant 0 : index
    %c0_4 = arith.constant 0 : index
    %3 = vector.load %arg3[%c0_3, %c0_4] : memref<512x1xf32, #tpu.memory_space<vmem>>, vector<512x1xf32>
    %4 = vector.broadcast %3 : vector<512x1xf32> to vector<512x128xf32>
    %5 = arith.addf %2, %4 : vector<512x128xf32>
    %cst_5 = arith.constant 0.000000e+00 : f32
    %6 = vector.broadcast %cst_5 : f32 to vector<512x128xf32>
    %7 = arith.maximumf %5, %6 : vector<512x128xf32>
    %c0_6 = arith.constant 0 : index
    %c0_7 = arith.constant 0 : index
    %8 = vector.load %arg4[%c0_6, %c0_7] : memref<384x512xbf16, #tpu.memory_space<vmem>>, vector<384x512xbf16>
    %9 = arith.truncf %7 : vector<512x128xf32> to vector<512x128xbf16>
    %cst_8 = arith.constant dense<0.000000e+00> : vector<384x128xf32>
    %10 = tpu.matmul %8, %9, %cst_8 {dimension_numbers = #tpu.dot_dimension_numbers<[1], [0], [0], [1], [0, 0, 1, 1], [], []>} : vector<384x512xbf16>, vector<512x128xbf16>, vector<384x128xf32> -> vector<384x128xf32>
    %c0_9 = arith.constant 0 : index
    %c0_10 = arith.constant 0 : index
    %11 = vector.load %arg5[%c0_9, %c0_10] : memref<384x1xf32, #tpu.memory_space<vmem>>, vector<384x1xf32>
    %12 = vector.broadcast %11 : vector<384x1xf32> to vector<384x128xf32>
    %13 = arith.addf %10, %12 : vector<384x128xf32>
    %cst_11 = arith.constant 0.000000e+00 : f32
    %14 = vector.broadcast %cst_11 : f32 to vector<384x128xf32>
    %15 = arith.maximumf %13, %14 : vector<384x128xf32>
    %c0_12 = arith.constant 0 : index
    %c0_13 = arith.constant 0 : index
    %16 = vector.load %arg6[%c0_12, %c0_13] : memref<1x384xf32, #tpu.memory_space<vmem>>, vector<1x384xf32>
    %cst_14 = arith.constant dense<0.000000e+00> : vector<1x128xf32>
    %17 = tpu.matmul %16, %15, %cst_14 {dimension_numbers = #tpu.dot_dimension_numbers<[1], [0], [0], [1], [0, 0, 1, 1], [], []>} : vector<1x384xf32>, vector<384x128xf32>, vector<1x128xf32> -> vector<1x128xf32>
    %c0_15 = arith.constant 0 : index
    %c0_16 = arith.constant 0 : index
    %18 = vector.load %arg7[%c0_15, %c0_16] : memref<1x1xf32, #tpu.memory_space<vmem>>, vector<1x1xf32>
    %19 = vector.broadcast %18 : vector<1x1xf32> to vector<1x128xf32>
    %20 = arith.addf %17, %19 : vector<1x128xf32>
    %c0_17 = arith.constant 0 : index
    %c0_18 = arith.constant 0 : index
    %21 = vector.load %arg8[%c0_17, %c0_18] : memref<1x128xf32, #tpu.memory_space<vmem>>, vector<1x128xf32>
    tpu.vector_store %arg8[%c0_17, %c0_18], %20 {strides = array<i32>} : memref<1x128xf32, #tpu.memory_space<vmem>>, vector<1x128xf32>,
    return
  }
  func.func @transform_0(%arg0: i32) -> (i32, i32) {
    %c0_i32 = arith.constant 0 : i32
    %c0_i32_0 = arith.constant 0 : i32
    return %c0_i32, %arg0 : i32, i32
  }
  func.func @transform_1(%arg0: i32) -> (i32, i32) {
    %c0_i32 = arith.constant 0 : i32
    %c0_i32_0 = arith.constant 0 : i32
    %c0_i32_1 = arith.constant 0 : i32
    return %c0_i32, %c0_i32_0 : i32, i32
  }
  func.func @transform_2(%arg0: i32) -> (i32, i32) {
    %c0_i32 = arith.constant 0 : i32
    %c0_i32_0 = arith.constant 0 : i32
    %c0_i32_1 = arith.constant 0 : i32
    return %c0_i32, %c0_i32_0 : i32, i32
  }
  func.func @transform_3(%arg0: i32) -> (i32, i32) {
    %c0_i32 = arith.constant 0 : i32
    %c0_i32_0 = arith.constant 0 : i32
    %c0_i32_1 = arith.constant 0 : i32
    return %c0_i32, %c0_i32_0 : i32, i32
  }
  func.func @transform_4(%arg0: i32) -> (i32, i32) {
    %c0_i32 = arith.constant 0 : i32
    %c0_i32_0 = arith.constant 0 : i32
    %c0_i32_1 = arith.constant 0 : i32
    return %c0_i32, %c0_i32_0 : i32, i32
  }
  func.func @transform_5(%arg0: i32) -> (i32, i32) {
    %c0_i32 = arith.constant 0 : i32
    %c0_i32_0 = arith.constant 0 : i32
    %c0_i32_1 = arith.constant 0 : i32
    return %c0_i32, %c0_i32_0 : i32, i32
  }
  func.func @transform_6(%arg0: i32) -> (i32, i32) {
    %c0_i32 = arith.constant 0 : i32
    %c0_i32_0 = arith.constant 0 : i32
    %c0_i32_1 = arith.constant 0 : i32
    return %c0_i32, %c0_i32_0 : i32, i32
  }
  func.func @transform_7(%arg0: i32) -> (i32, i32) {
    %c0_i32 = arith.constant 0 : i32
    %c0_i32_0 = arith.constant 0 : i32
    return %c0_i32, %arg0 : i32, i32
  }
}

</mosaic_0001>

<llo_original>
// kernel: tpu_custom_call.1
$region0: #{tpu_custom_call.1}
  #allocation0 [shape = 'u32[]', space=smem, size = 0x4, offset = 0x4, fixed_abs, tag = 'smem constant byte address 0x4 - core index']
  #allocation1 [shape = 'u32[72,128]{1,0:T(1,128)}', space=vmem, size = 0x9000, scoped, tag = 'internal scratch']
  #allocation2 [shape = 'f32[1,1]{1,0:T(1,128)S(1)}', space=vmem, size = 0x200, scoped, tag = 'scoped memory for tpu_custom_call.1']
  %s0 = inlined_call_operand.vmem [shape: bf16[16,128], index: 0, kind: input, shape index: {}]
  %s1 = inlined_call_operand.vmem [shape: bf16[512,16], index: 1, kind: input, shape index: {}]
  %s2 = inlined_call_operand.vmem [shape: f32[512,1], index: 2, kind: input, shape index: {}]
  %s3 = inlined_call_operand.vmem [shape: bf16[384,512], index: 3, kind: input, shape index: {}]
  %s4 = inlined_call_operand.vmem [shape: f32[384,1], index: 4, kind: input, shape index: {}]
  %s5 = inlined_call_operand.vmem [shape: f32[1,384], index: 5, kind: input, shape index: {}]
  %s6 = inlined_call_operand.<no memory space> [shape: f32[1,1], index: 6, kind: input, shape index: {}]
  %s7 = inlined_call_operand.hbm [shape: f32[1,128], index: 7, kind: output, shape index: {}]
  %s8 = sld [smem:[#allocation0]]
  $region38: #{tpu_custom_call.1} parent=0
    _
  %s10 = ssub.s32 1, %s8
  %s11 = scalar_select 0, %s10, %s8
  %v12 = vstv %s6
  %13 = vst [vmem:[#allocation2] sm:$0x1] %v12
  $region1: #{tpu_custom_call.1} parent=0
    #allocation3 [shape = 'u8[512]{0}', space=vmem, size = 0x400, scoped, tag = 'output window, operand 0, single buffered']
    #allocation4 [shape = 's32[1]{0}', space=sflag, size = 0x4, scoped, tag = 'scoped memory for tpu_custom_call.1']
    %14 = vsyncpa [#allocation4], 0
    // Predicated region
    $region2: #{tpu_custom_call.1} parent=1 // pred_check
      _
    $region3: #{tpu_custom_call.1} parent=1 // pred_check_branch
      %16 = sbr.rel (0) target = $region5
    $region4: #{tpu_custom_call.1} parent=1 // pred_region
      _
    $region5: #{tpu_custom_call.1} parent=1 // pred_fallthru
      _
    // Predicated region
    $region6: #{tpu_custom_call.1} parent=1 // pred_check
      _
    $region7: #{tpu_custom_call.1} parent=1 // pred_check_branch
      %18 = sbr.rel (0) target = $region9
    $region8: #{tpu_custom_call.1} parent=1 // pred_region
      _
    $region9: #{tpu_custom_call.1} parent=1 // pred_fallthru
      _
    // Predicated region
    $region10: #{tpu_custom_call.1} parent=1 // pred_check
      _
    $region11: #{tpu_custom_call.1} parent=1 // pred_check_branch
      %20 = sbr.rel (0) target = $region13
    $region12: #{tpu_custom_call.1} parent=1 // pred_region
      _
    $region13: #{tpu_custom_call.1} parent=1 // pred_fallthru
      _
    // Predicated region
    $region14: #{tpu_custom_call.1} parent=1 // pred_check
      _
    $region15: #{tpu_custom_call.1} parent=1 // pred_check_branch
      %22 = sbr.rel (0) target = $region17
    $region16: #{tpu_custom_call.1} parent=1 // pred_region
      _
    $region17: #{tpu_custom_call.1} parent=1 // pred_fallthru
      _
    // Predicated region
    $region18: #{tpu_custom_call.1} parent=1 // pred_check
      _
    $region19: #{tpu_custom_call.1} parent=1 // pred_check_branch
      %24 = sbr.rel (0) target = $region21
    $region20: #{tpu_custom_call.1} parent=1 // pred_region
      _
    $region21: #{tpu_custom_call.1} parent=1 // pred_fallthru
      _
    // Predicated region
    $region22: #{tpu_custom_call.1} parent=1 // pred_check
      _
    $region23: #{tpu_custom_call.1} parent=1 // pred_check_branch
      %26 = sbr.rel (0) target = $region25
    $region24: #{tpu_custom_call.1} parent=1 // pred_region
      _
    $region25: #{tpu_custom_call.1} parent=1 // pred_fallthru
      _
    // Predicated region
    $region26: #{tpu_custom_call.1} parent=1 // pred_check
      _
    $region27: #{tpu_custom_call.1} parent=1 // pred_check_branch
      %28 = sbr.rel (0) target = $region29
    $region28: #{tpu_custom_call.1} parent=1 // pred_region
      _
    $region29: #{tpu_custom_call.1} parent=1 // pred_fallthru
      _
    %v30 = vld [vmem:[%s1] sm:$0xf]
    %v31 = vld [vmem:[%s1 + $0x4] sm:$0xf]
    %v32 = vld [vmem:[%s1 + $0x8] sm:$0xf]
    %v33 = vld [vmem:[%s1 + $0xc] sm:$0xf]
    %v34 = vld [vmem:[%s1 + $0x10] sm:$0xf]
    %v35 = vld [vmem:[%s1 + $0x14] sm:$0xf]
    %v36 = vld [vmem:[%s1 + $0x18] sm:$0xf]
    %v37 = vld [vmem:[%s1 + $0x1c] sm:$0xf]
    %v38 = vld [vmem:[%s1 + $0x20] sm:$0xf]
    %v39 = vld [vmem:[%s1 + $0x24] sm:$0xf]
    %v40 = vld [vmem:[%s1 + $0x28] sm:$0xf]
    %v41 = vld [vmem:[%s1 + $0x2c] sm:$0xf]
    %v42 = vld [vmem:[%s1 + $0x30] sm:$0xf]
    %v43 = vld [vmem:[%s1 + $0x34] sm:$0xf]
    %v44 = vld [vmem:[%s1 + $0x38] sm:$0xf]
    %v45 = vld [vmem:[%s1 + $0x3c] sm:$0xf]
    %v46 = vld [vmem:[%s1 + $0x40] sm:$0xf]
    %v47 = vld [vmem:[%s1 + $0x44] sm:$0xf]
    %v48 = vld [vmem:[%s1 + $0x48] sm:$0xf]
    %v49 = vld [vmem:[%s1 + $0x4c] sm:$0xf]
    %v50 = vld [vmem:[%s1 + $0x50] sm:$0xf]
    %v51 = vld [vmem:[%s1 + $0x54] sm:$0xf]
    %v52 = vld [vmem:[%s1 + $0x58] sm:$0xf]
    %v53 = vld [vmem:[%s1 + $0x5c] sm:$0xf]
    %v54 = vld [vmem:[%s1 + $0x60] sm:$0xf]
    %v55 = vld [vmem:[%s1 + $0x64] sm:$0xf]
    %v56 = vld [vmem:[%s1 + $0x68] sm:$0xf]
    %v57 = vld [vmem:[%s1 + $0x6c] sm:$0xf]
    %v58 = vld [vmem:[%s1 + $0x70] sm:$0xf]
    %v59 = vld [vmem:[%s1 + $0x74] sm:$0xf]
    %v60 = vld [vmem:[%s1 + $0x78] sm:$0xf]
    %v61 = vld [vmem:[%s1 + $0x7c] sm:$0xf]
    %v62 = vld [vmem:[%s1 + $0x80] sm:$0xf]
    %v63 = vld [vmem:[%s1 + $0x84] sm:$0xf]
    %v64 = vld [vmem:[%s1 + $0x88] sm:$0xf]
    %v65 = vld [vmem:[%s1 + $0x8c] sm:$0xf]
    %v66 = vld [vmem:[%s1 + $0x90] sm:$0xf]
    %v67 = vld [vmem:[%s1 + $0x94] sm:$0xf]
    %v68 = vld [vmem:[%s1 + $0x98] sm:$0xf]
    %v69 = vld [vmem:[%s1 + $0x9c] sm:$0xf]
    %v70 = vld [vmem:[%s1 + $0xa0] sm:$0xf]
    %v71 = vld [vmem:[%s1 + $0xa4] sm:$0xf]
    %v72 = vld [vmem:[%s1 + $0xa8] sm:$0xf]
    %v73 = vld [vmem:[%s1 + $0xac] sm:$0xf]
    %v74 = vld [vmem:[%s1 + $0xb0] sm:$0xf]
    %v75 = vld [vmem:[%s1 + $0xb4] sm:$0xf]
    %v76 = vld [vmem:[%s1 + $0xb8] sm:$0xf]
    %v77 = vld [vmem:[%s1 + $0xbc] sm:$0xf]
    %v78 = vld [vmem:[%s1 + $0xc0] sm:$0xf]
    %v79 = vld [vmem:[%s1 + $0xc4] sm:$0xf]
    %v80 = vld [vmem:[%s1 + $0xc8] sm:$0xf]
    %v81 = vld [vmem:[%s1 + $0xcc] sm:$0xf]
    %v82 = vld [vmem:[%s1 + $0xd0] sm:$0xf]
    %v83 = vld [vmem:[%s1 + $0xd4] sm:$0xf]
    %v84 = vld [vmem:[%s1 + $0xd8] sm:$0xf]
    %v85 = vld [vmem:[%s1 + $0xdc] sm:$0xf]
    %v86 = vld [vmem:[%s1 + $0xe0] sm:$0xf]
    %v87 = vld [vmem:[%s1 + $0xe4] sm:$0xf]
    %v88 = vld [vmem:[%s1 + $0xe8] sm:$0xf]
    %v89 = vld [vmem:[%s1 + $0xec] sm:$0xf]
    %v90 = vld [vmem:[%s1 + $0xf0] sm:$0xf]
    %v91 = vld [vmem:[%s1 + $0xf4] sm:$0xf]
    %v92 = vld [vmem:[%s1 + $0xf8] sm:$0xf]
    %v93 = vld [vmem:[%s1 + $0xfc] sm:$0xf]
    %v94 = vld [vmem:[%s0] sm:$0xf]
    %v95 = vld [vmem:[%s0 + $0x4] sm:$0xf]
    %v96 = vld [vmem:[%s2] sm:$0xff]
    %v97 = vld [vmem:[%s2 + $0x8] sm:$0xff]
    %v98 = vld [vmem:[%s2 + $0x10] sm:$0xff]
    %v99 = vld [vmem:[%s2 + $0x18] sm:$0xff]
    %v100 = vld [vmem:[%s2 + $0x20] sm:$0xff]
    %v101 = vld [vmem:[%s2 + $0x28] sm:$0xff]
    %v102 = vld [vmem:[%s2 + $0x30] sm:$0xff]
    %v103 = vld [vmem:[%s2 + $0x38] sm:$0xff]
    %v104 = vld [vmem:[%s2 + $0x40] sm:$0xff]
    %v105 = vld [vmem:[%s2 + $0x48] sm:$0xff]
    %v106 = vld [vmem:[%s2 + $0x50] sm:$0xff]
    %v107 = vld [vmem:[%s2 + $0x58] sm:$0xff]
    %v108 = vld [vmem:[%s2 + $0x60] sm:$0xff]
    %v109 = vld [vmem:[%s2 + $0x68] sm:$0xff]
    %v110 = vld [vmem:[%s2 + $0x70] sm:$0xff]
    %v111 = vld [vmem:[%s2 + $0x78] sm:$0xff]
    %v112 = vld [vmem:[%s2 + $0x80] sm:$0xff]
    %v113 = vld [vmem:[%s2 + $0x88] sm:$0xff]
    %v114 = vld [vmem:[%s2 + $0x90] sm:$0xff]
    %v115 = vld [vmem:[%s2 + $0x98] sm:$0xff]
    %v116 = vld [vmem:[%s2 + $0xa0] sm:$0xff]
    %v117 = vld [vmem:[%s2 + $0xa8] sm:$0xff]
    %v118 = vld [vmem:[%s2 + $0xb0] sm:$0xff]
    %v119 = vld [vmem:[%s2 + $0xb8] sm:$0xff]
    %v120 = vld [vmem:[%s2 + $0xc0] sm:$0xff]
    %v121 = vld [vmem:[%s2 + $0xc8] sm:$0xff]
    %v122 = vld [vmem:[%s2 + $0xd0] sm:$0xff]
    %v123 = vld [vmem:[%s2 + $0xd8] sm:$0xff]
    %v124 = vld [vmem:[%s2 + $0xe0] sm:$0xff]
    %v125 = vld [vmem:[%s2 + $0xe8] sm:$0xff]
    %v126 = vld [vmem:[%s2 + $0xf0] sm:$0xff]
    %v127 = vld [vmem:[%s2 + $0xf8] sm:$0xff]
    %v128 = vld [vmem:[%s2 + $0x100] sm:$0xff]
    %v129 = vld [vmem:[%s2 + $0x108] sm:$0xff]
    %v130 = vld [vmem:[%s2 + $0x110] sm:$0xff]
    %v131 = vld [vmem:[%s2 + $0x118] sm:$0xff]
    %v132 = vld [vmem:[%s2 + $0x120] sm:$0xff]
    %v133 = vld [vmem:[%s2 + $0x128] sm:$0xff]
    %v134 = vld [vmem:[%s2 + $0x130] sm:$0xff]
    %v135 = vld [vmem:[%s2 + $0x138] sm:$0xff]
    %v136 = vld [vmem:[%s2 + $0x140] sm:$0xff]
    %v137 = vld [vmem:[%s2 + $0x148] sm:$0xff]
    %v138 = vld [vmem:[%s2 + $0x150] sm:$0xff]
    %v139 = vld [vmem:[%s2 + $0x158] sm:$0xff]
    %v140 = vld [vmem:[%s2 + $0x160] sm:$0xff]
    %v141 = vld [vmem:[%s2 + $0x168] sm:$0xff]
    %v142 = vld [vmem:[%s2 + $0x170] sm:$0xff]
    %v143 = vld [vmem:[%s2 + $0x178] sm:$0xff]
    %v144 = vld [vmem:[%s2 + $0x180] sm:$0xff]
    %v145 = vld [vmem:[%s2 + $0x188] sm:$0xff]
    %v146 = vld [vmem:[%s2 + $0x190] sm:$0xff]
    %v147 = vld [vmem:[%s2 + $0x198] sm:$0xff]
    %v148 = vld [vmem:[%s2 + $0x1a0] sm:$0xff]
    %v149 = vld [vmem:[%s2 + $0x1a8] sm:$0xff]
    %v150 = vld [vmem:[%s2 + $0x1b0] sm:$0xff]
    %v151 = vld [vmem:[%s2 + $0x1b8] sm:$0xff]
    %v152 = vld [vmem:[%s2 + $0x1c0] sm:$0xff]
    %v153 = vld [vmem:[%s2 + $0x1c8] sm:$0xff]
    %v154 = vld [vmem:[%s2 + $0x1d0] sm:$0xff]
    %v155 = vld [vmem:[%s2 + $0x1d8] sm:$0xff]
    %v156 = vld [vmem:[%s2 + $0x1e0] sm:$0xff]
    %v157 = vld [vmem:[%s2 + $0x1e8] sm:$0xff]
    %v158 = vld [vmem:[%s2 + $0x1f0] sm:$0xff]
    %v159 = vld [vmem:[%s2 + $0x1f8] sm:$0xff]
    %161 = vset.pattern.permute.xlu0 0
    %162 = vperm.xlu0 %161, %v96
    %v163 = vpop.permute.xlu0 %162
    %166 = vset.pattern.permute.xlu0 0
    %167 = vperm.xlu0 %166, %v97
    %v168 = vpop.permute.xlu0 %167
    %171 = vset.pattern.permute.xlu0 0
    %172 = vperm.xlu0 %171, %v98
    %v173 = vpop.permute.xlu0 %172
    %176 = vset.pattern.permute.xlu0 0
    %177 = vperm.xlu0 %176, %v99
    %v178 = vpop.permute.xlu0 %177
    %181 = vset.pattern.permute.xlu0 0
    %182 = vperm.xlu0 %181, %v100
    %v183 = vpop.permute.xlu0 %182
    %186 = vset.pattern.permute.xlu0 0
    %187 = vperm.xlu0 %186, %v101
    %v188 = vpop.permute.xlu0 %187
    %191 = vset.pattern.permute.xlu0 0
    %192 = vperm.xlu0 %191, %v102
    %v193 = vpop.permute.xlu0 %192
    %196 = vset.pattern.permute.xlu0 0
    %197 = vperm.xlu0 %196, %v103
    %v198 = vpop.permute.xlu0 %197
    %201 = vset.pattern.permute.xlu0 0
    %202 = vperm.xlu0 %201, %v104
    %v203 = vpop.permute.xlu0 %202
    %206 = vset.pattern.permute.xlu0 0
    %207 = vperm.xlu0 %206, %v105
    %v208 = vpop.permute.xlu0 %207
    %211 = vset.pattern.permute.xlu0 0
    %212 = vperm.xlu0 %211, %v106
    %v213 = vpop.permute.xlu0 %212
    %216 = vset.pattern.permute.xlu0 0
    %217 = vperm.xlu0 %216, %v107
    %v218 = vpop.permute.xlu0 %217
    %221 = vset.pattern.permute.xlu0 0
    %222 = vperm.xlu0 %221, %v108
    %v223 = vpop.permute.xlu0 %222
    %226 = vset.pattern.permute.xlu0 0
    %227 = vperm.xlu0 %226, %v109
    %v228 = vpop.permute.xlu0 %227
    %231 = vset.pattern.permute.xlu0 0
    %232 = vperm.xlu0 %231, %v110
    %v233 = vpop.permute.xlu0 %232
    %236 = vset.pattern.permute.xlu0 0
    %237 = vperm.xlu0 %236, %v111
    %v238 = vpop.permute.xlu0 %237
    %241 = vset.pattern.permute.xlu0 0
    %242 = vperm.xlu0 %241, %v112
    %v243 = vpop.permute.xlu0 %242
    %246 = vset.pattern.permute.xlu0 0
    %247 = vperm.xlu0 %246, %v113
    %v248 = vpop.permute.xlu0 %247
    %251 = vset.pattern.permute.xlu0 0
    %252 = vperm.xlu0 %251, %v114
    %v253 = vpop.permute.xlu0 %252
    %256 = vset.pattern.permute.xlu0 0
    %257 = vperm.xlu0 %256, %v115
    %v258 = vpop.permute.xlu0 %257
    %261 = vset.pattern.permute.xlu0 0
    %262 = vperm.xlu0 %261, %v116
    %v263 = vpop.permute.xlu0 %262
    %266 = vset.pattern.permute.xlu0 0
    %267 = vperm.xlu0 %266, %v117
    %v268 = vpop.permute.xlu0 %267
    %271 = vset.pattern.permute.xlu0 0
    %272 = vperm.xlu0 %271, %v118
    %v273 = vpop.permute.xlu0 %272
    %276 = vset.pattern.permute.xlu0 0
    %277 = vperm.xlu0 %276, %v119
    %v278 = vpop.permute.xlu0 %277
    %281 = vset.pattern.permute.xlu0 0
    %282 = vperm.xlu0 %281, %v120
    %v283 = vpop.permute.xlu0 %282
    %286 = vset.pattern.permute.xlu0 0
    %287 = vperm.xlu0 %286, %v121
    %v288 = vpop.permute.xlu0 %287
    %291 = vset.pattern.permute.xlu0 0
    %292 = vperm.xlu0 %291, %v122
    %v293 = vpop.permute.xlu0 %292
    %296 = vset.pattern.permute.xlu0 0
    %297 = vperm.xlu0 %296, %v123
    %v298 = vpop.permute.xlu0 %297
    %301 = vset.pattern.permute.xlu0 0
    %302 = vperm.xlu0 %301, %v124
    %v303 = vpop.permute.xlu0 %302
    %306 = vset.pattern.permute.xlu0 0
    %307 = vperm.xlu0 %306, %v125
    %v308 = vpop.permute.xlu0 %307
    %311 = vset.pattern.permute.xlu0 0
    %312 = vperm.xlu0 %311, %v126
    %v313 = vpop.permute.xlu0 %312
    %316 = vset.pattern.permute.xlu0 0
    %317 = vperm.xlu0 %316, %v127
    %v318 = vpop.permute.xlu0 %317
    %321 = vset.pattern.permute.xlu0 0
    %322 = vperm.xlu0 %321, %v128
    %v323 = vpop.permute.xlu0 %322
    %326 = vset.pattern.permute.xlu0 0
    %327 = vperm.xlu0 %326, %v129
    %v328 = vpop.permute.xlu0 %327
    %331 = vset.pattern.permute.xlu0 0
    %332 = vperm.xlu0 %331, %v130
    %v333 = vpop.permute.xlu0 %332
    %336 = vset.pattern.permute.xlu0 0
    %337 = vperm.xlu0 %336, %v131
    %v338 = vpop.permute.xlu0 %337
    %341 = vset.pattern.permute.xlu0 0
    %342 = vperm.xlu0 %341, %v132
    %v343 = vpop.permute.xlu0 %342
    %346 = vset.pattern.permute.xlu0 0
    %347 = vperm.xlu0 %346, %v133
    %v348 = vpop.permute.xlu0 %347
    %351 = vset.pattern.permute.xlu0 0
    %352 = vperm.xlu0 %351, %v134
    %v353 = vpop.permute.xlu0 %352
    %356 = vset.pattern.permute.xlu0 0
    %357 = vperm.xlu0 %356, %v135
    %v358 = vpop.permute.xlu0 %357
    %361 = vset.pattern.permute.xlu0 0
    %362 = vperm.xlu0 %361, %v136
    %v363 = vpop.permute.xlu0 %362
    %366 = vset.pattern.permute.xlu0 0
    %367 = vperm.xlu0 %366, %v137
    %v368 = vpop.permute.xlu0 %367
    %371 = vset.pattern.permute.xlu0 0
    %372 = vperm.xlu0 %371, %v138
    %v373 = vpop.permute.xlu0 %372
    %376 = vset.pattern.permute.xlu0 0
    %377 = vperm.xlu0 %376, %v139
    %v378 = vpop.permute.xlu0 %377
    %381 = vset.pattern.permute.xlu0 0
    %382 = vperm.xlu0 %381, %v140
    %v383 = vpop.permute.xlu0 %382
    %386 = vset.pattern.permute.xlu0 0
    %387 = vperm.xlu0 %386, %v141
    %v388 = vpop.permute.xlu0 %387
    %391 = vset.pattern.permute.xlu0 0
    %392 = vperm.xlu0 %391, %v142
    %v393 = vpop.permute.xlu0 %392
    %396 = vset.pattern.permute.xlu0 0
    %397 = vperm.xlu0 %396, %v143
    %v398 = vpop.permute.xlu0 %397
    %401 = vset.pattern.permute.xlu0 0
    %402 = vperm.xlu0 %401, %v144
    %v403 = vpop.permute.xlu0 %402
    %406 = vset.pattern.permute.xlu0 0
    %407 = vperm.xlu0 %406, %v145
    %v408 = vpop.permute.xlu0 %407
    %411 = vset.pattern.permute.xlu0 0
    %412 = vperm.xlu0 %411, %v146
    %v413 = vpop.permute.xlu0 %412
    %416 = vset.pattern.permute.xlu0 0
    %417 = vperm.xlu0 %416, %v147
    %v418 = vpop.permute.xlu0 %417
    %421 = vset.pattern.permute.xlu0 0
    %422 = vperm.xlu0 %421, %v148
    %v423 = vpop.permute.xlu0 %422
    %426 = vset.pattern.permute.xlu0 0
    %427 = vperm.xlu0 %426, %v149
    %v428 = vpop.permute.xlu0 %427
    %431 = vset.pattern.permute.xlu0 0
    %432 = vperm.xlu0 %431, %v150
    %v433 = vpop.permute.xlu0 %432
    %436 = vset.pattern.permute.xlu0 0
    %437 = vperm.xlu0 %436, %v151
    %v438 = vpop.permute.xlu0 %437
    %441 = vset.pattern.permute.xlu0 0
    %442 = vperm.xlu0 %441, %v152
    %v443 = vpop.permute.xlu0 %442
    %446 = vset.pattern.permute.xlu0 0
    %447 = vperm.xlu0 %446, %v153
    %v448 = vpop.permute.xlu0 %447
    %451 = vset.pattern.permute.xlu0 0
    %452 = vperm.xlu0 %451, %v154
    %v453 = vpop.permute.xlu0 %452
    %456 = vset.pattern.permute.xlu0 0
    %457 = vperm.xlu0 %456, %v155
    %v458 = vpop.permute.xlu0 %457
    %461 = vset.pattern.permute.xlu0 0
    %462 = vperm.xlu0 %461, %v156
    %v463 = vpop.permute.xlu0 %462
    %466 = vset.pattern.permute.xlu0 0
    %467 = vperm.xlu0 %466, %v157
    %v468 = vpop.permute.xlu0 %467
    %471 = vset.pattern.permute.xlu0 0
    %472 = vperm.xlu0 %471, %v158
    %v473 = vpop.permute.xlu0 %472
    %476 = vset.pattern.permute.xlu0 0
    %477 = vperm.xlu0 %476, %v159
    %v478 = vpop.permute.xlu0 %477
    %v544 = vunpack.c.l.b16 %v30
    %v545 = vunpack.c.l.b16 %v31
    %v546 = vunpack.c.l.b16 %v32
    %v547 = vunpack.c.l.b16 %v33
    %v548 = vunpack.c.l.b16 %v34
    %v549 = vunpack.c.l.b16 %v35
    %v550 = vunpack.c.l.b16 %v36
    %v551 = vunpack.c.l.b16 %v37
    %v552 = vunpack.c.l.b16 %v38
    %v553 = vunpack.c.l.b16 %v39
    %v554 = vunpack.c.l.b16 %v40
    %v555 = vunpack.c.l.b16 %v41
    %v556 = vunpack.c.l.b16 %v42
    %v557 = vunpack.c.l.b16 %v43
    %v558 = vunpack.c.l.b16 %v44
    %v559 = vunpack.c.l.b16 %v45
    %v560 = vunpack.c.l.b16 %v46
    %v561 = vunpack.c.l.b16 %v47
    %v562 = vunpack.c.l.b16 %v48
    %v563 = vunpack.c.l.b16 %v49
    %v564 = vunpack.c.l.b16 %v50
    %v565 = vunpack.c.l.b16 %v51
    %v566 = vunpack.c.l.b16 %v52
    %v567 = vunpack.c.l.b16 %v53
    %v568 = vunpack.c.l.b16 %v54
    %v569 = vunpack.c.l.b16 %v55
    %v570 = vunpack.c.l.b16 %v56
    %v571 = vunpack.c.l.b16 %v57
    %v572 = vunpack.c.l.b16 %v58
    %v573 = vunpack.c.l.b16 %v59
    %v574 = vunpack.c.l.b16 %v60
    %v575 = vunpack.c.l.b16 %v61
    %v576 = vunpack.c.l.b16 %v62
    %v577 = vunpack.c.l.b16 %v63
    %v578 = vunpack.c.l.b16 %v64
    %v579 = vunpack.c.l.b16 %v65
    %v580 = vunpack.c.l.b16 %v66
    %v581 = vunpack.c.l.b16 %v67
    %v582 = vunpack.c.l.b16 %v68
    %v583 = vunpack.c.l.b16 %v69
    %v584 = vunpack.c.l.b16 %v70
    %v585 = vunpack.c.l.b16 %v71
    %v586 = vunpack.c.l.b16 %v72
    %v587 = vunpack.c.l.b16 %v73
    %v588 = vunpack.c.l.b16 %v74
    %v589 = vunpack.c.l.b16 %v75
    %v590 = vunpack.c.l.b16 %v76
    %v591 = vunpack.c.l.b16 %v77
    %v592 = vunpack.c.l.b16 %v78
    %v593 = vunpack.c.l.b16 %v79
    %v594 = vunpack.c.l.b16 %v80
    %v595 = vunpack.c.l.b16 %v81
    %v596 = vunpack.c.l.b16 %v82
    %v597 = vunpack.c.l.b16 %v83
    %v598 = vunpack.c.l.b16 %v84
    %v599 = vunpack.c.l.b16 %v85
    %v600 = vunpack.c.l.b16 %v86
    %v601 = vunpack.c.l.b16 %v87
    %v602 = vunpack.c.l.b16 %v88
    %v603 = vunpack.c.l.b16 %v89
    %v604 = vunpack.c.l.b16 %v90
    %v605 = vunpack.c.l.b16 %v91
    %v606 = vunpack.c.l.b16 %v92
    %v607 = vunpack.c.l.b16 %v93
    %v608 = vpack.c.b16 %v545, %v544
    %v609 = vpack.c.b16 %v547, %v546
    %v610 = vpack.c.b16 %v549, %v548
    %v611 = vpack.c.b16 %v551, %v550
    %v612 = vpack.c.b16 %v553, %v552
    %v613 = vpack.c.b16 %v555, %v554
    %v614 = vpack.c.b16 %v557, %v556
    %v615 = vpack.c.b16 %v559, %v558
    %v616 = vpack.c.b16 %v561, %v560
    %v617 = vpack.c.b16 %v563, %v562
    %v618 = vpack.c.b16 %v565, %v564
    %v619 = vpack.c.b16 %v567, %v566
    %v620 = vpack.c.b16 %v569, %v568
    %v621 = vpack.c.b16 %v571, %v570
    %v622 = vpack.c.b16 %v573, %v572
    %v623 = vpack.c.b16 %v575, %v574
    %v624 = vpack.c.b16 %v577, %v576
    %v625 = vpack.c.b16 %v579, %v578
    %v626 = vpack.c.b16 %v581, %v580
    %v627 = vpack.c.b16 %v583, %v582
    %v628 = vpack.c.b16 %v585, %v584
    %v629 = vpack.c.b16 %v587, %v586
    %v630 = vpack.c.b16 %v589, %v588
    %v631 = vpack.c.b16 %v591, %v590
    %v632 = vpack.c.b16 %v593, %v592
    %v633 = vpack.c.b16 %v595, %v594
    %v634 = vpack.c.b16 %v597, %v596
    %v635 = vpack.c.b16 %v599, %v598
    %v636 = vpack.c.b16 %v601, %v600
    %v637 = vpack.c.b16 %v603, %v602
    %v638 = vpack.c.b16 %v605, %v604
    %v639 = vpack.c.b16 %v607, %v606
    %v642 = vunpack.c.l.b16 %v94
    %v643 = vunpack.c.l.b16 %v95
    %v644 = vpack.c.b16 %v643, %v642
    %vm646 = vcmask 130048
    %v648 = vsel %vm646, %v608, 0
    %v651 = vsel %vm646, %v609, 0
    %v654 = vsel %vm646, %v610, 0
    %v657 = vsel %vm646, %v611, 0
    %v660 = vsel %vm646, %v612, 0
    %v663 = vsel %vm646, %v613, 0
    %v666 = vsel %vm646, %v614, 0
    %v669 = vsel %vm646, %v615, 0
    %v672 = vsel %vm646, %v616, 0
    %v675 = vsel %vm646, %v617, 0
    %v678 = vsel %vm646, %v618, 0
    %v681 = vsel %vm646, %v619, 0
    %v684 = vsel %vm646, %v620, 0
    %v687 = vsel %vm646, %v621, 0
    %v690 = vsel %vm646, %v622, 0
    %v693 = vsel %vm646, %v623, 0
    %v696 = vsel %vm646, %v624, 0
    %v699 = vsel %vm646, %v625, 0
    %v702 = vsel %vm646, %v626, 0
    %v705 = vsel %vm646, %v627, 0
    %v708 = vsel %vm646, %v628, 0
    %v711 = vsel %vm646, %v629, 0
    %v714 = vsel %vm646, %v630, 0
    %v717 = vsel %vm646, %v631, 0
    %v720 = vsel %vm646, %v632, 0
    %v723 = vsel %vm646, %v633, 0
    %v726 = vsel %vm646, %v634, 0
    %v729 = vsel %vm646, %v635, 0
    %v732 = vsel %vm646, %v636, 0
    %v735 = vsel %vm646, %v637, 0
    %v738 = vsel %vm646, %v638, 0
    %v741 = vsel %vm646, %v639, 0
    %743 = vmatpush.bf16.msra.mxu0 0
    %744 = vmatpush.bf16.msra.mxu0 0
    %745 = vmatpush.bf16.msra.mxu0 0
    %746 = vmatpush.bf16.msra.mxu0 0
    %747 = vmatpush.bf16.msra.mxu0 0
    %748 = vmatpush.bf16.msra.mxu0 0
    %749 = vmatpush.bf16.msra.mxu0 0
    %750 = vmatpush.bf16.msra.mxu0 %v644
    %751 = vmatmul.bf16.gmra.mxu0 %v648
    %v752 = vpop.f32.mrf.mxu0
    %v753 = vadd.f32 %v163, %v752
    %v754 = vpop.f32.mrf.mxu0
    %v755 = vadd.f32 %v168, %v754
    %756 = vmatmul.bf16.gmra.mxu0 %v651
    %v757 = vpop.f32.mrf.mxu0
    %v758 = vadd.f32 %v173, %v757
    %v759 = vpop.f32.mrf.mxu0
    %v760 = vadd.f32 %v178, %v759
    %761 = vmatmul.bf16.gmra.mxu0 %v654
    %v762 = vpop.f32.mrf.mxu0
    %v763 = vadd.f32 %v183, %v762
    %v764 = vpop.f32.mrf.mxu0
    %v765 = vadd.f32 %v188, %v764
    %766 = vmatmul.bf16.gmra.mxu0 %v657
    %v767 = vpop.f32.mrf.mxu0
    %v768 = vadd.f32 %v193, %v767
    %v769 = vpop.f32.mrf.mxu0
    %v770 = vadd.f32 %v198, %v769
    %771 = vmatmul.bf16.gmra.mxu0 %v660
    %v772 = vpop.f32.mrf.mxu0
    %v773 = vadd.f32 %v203, %v772
    %v774 = vpop.f32.mrf.mxu0
    %v775 = vadd.f32 %v208, %v774
    %776 = vmatmul.bf16.gmra.mxu0 %v663
    %v777 = vpop.f32.mrf.mxu0
    %v778 = vadd.f32 %v213, %v777
    %v779 = vpop.f32.mrf.mxu0
    %v780 = vadd.f32 %v218, %v779
    %781 = vmatmul.bf16.gmra.mxu0 %v666
    %v782 = vpop.f32.mrf.mxu0
    %v783 = vadd.f32 %v223, %v782
    %v784 = vpop.f32.mrf.mxu0
    %v785 = vadd.f32 %v228, %v784
    %786 = vmatmul.bf16.gmra.mxu0 %v669
    %v787 = vpop.f32.mrf.mxu0
    %v788 = vadd.f32 %v233, %v787
    %v789 = vpop.f32.mrf.mxu0
    %v790 = vadd.f32 %v238, %v789
    %791 = vmatmul.bf16.gmra.mxu0 %v672
    %v792 = vpop.f32.mrf.mxu0
    %v793 = vadd.f32 %v243, %v792
    %v794 = vpop.f32.mrf.mxu0
    %v795 = vadd.f32 %v248, %v794
    %796 = vmatmul.bf16.gmra.mxu0 %v675
    %v797 = vpop.f32.mrf.mxu0
    %v798 = vadd.f32 %v253, %v797
    %v799 = vpop.f32.mrf.mxu0
    %v800 = vadd.f32 %v258, %v799
    %801 = vmatmul.bf16.gmra.mxu0 %v678
    %v802 = vpop.f32.mrf.mxu0
    %v803 = vadd.f32 %v263, %v802
    %v804 = vpop.f32.mrf.mxu0
    %v805 = vadd.f32 %v268, %v804
    %806 = vmatmul.bf16.gmra.mxu0 %v681
    %v807 = vpop.f32.mrf.mxu0
    %v808 = vadd.f32 %v273, %v807
    %v809 = vpop.f32.mrf.mxu0
    %v810 = vadd.f32 %v278, %v809
    %811 = vmatmul.bf16.gmra.mxu0 %v684
    %v812 = vpop.f32.mrf.mxu0
    %v813 = vadd.f32 %v283, %v812
    %v814 = vpop.f32.mrf.mxu0
    %v815 = vadd.f32 %v288, %v814
    %816 = vmatmul.bf16.gmra.mxu0 %v687
    %v817 = vpop.f32.mrf.mxu0
    %v818 = vadd.f32 %v293, %v817
    %v819 = vpop.f32.mrf.mxu0
    %v820 = vadd.f32 %v298, %v819
    %821 = vmatmul.bf16.gmra.mxu0 %v690
    %v822 = vpop.f32.mrf.mxu0
    %v823 = vadd.f32 %v303, %v822
    %v824 = vpop.f32.mrf.mxu0
    %v825 = vadd.f32 %v308, %v824
    %826 = vmatmul.bf16.gmra.mxu0 %v693
    %v827 = vpop.f32.mrf.mxu0
    %v828 = vadd.f32 %v313, %v827
    %v829 = vpop.f32.mrf.mxu0
    %v830 = vadd.f32 %v318, %v829
    %831 = vmatmul.bf16.gmra.mxu0 %v696
    %v832 = vpop.f32.mrf.mxu0
    %v833 = vadd.f32 %v323, %v832
    %v834 = vpop.f32.mrf.mxu0
    %v835 = vadd.f32 %v328, %v834
    %836 = vmatmul.bf16.gmra.mxu0 %v699
    %v837 = vpop.f32.mrf.mxu0
    %v838 = vadd.f32 %v333, %v837
    %v839 = vpop.f32.mrf.mxu0
    %v840 = vadd.f32 %v338, %v839
    %841 = vmatmul.bf16.gmra.mxu0 %v702
    %v842 = vpop.f32.mrf.mxu0
    %v843 = vadd.f32 %v343, %v842
    %v844 = vpop.f32.mrf.mxu0
    %v845 = vadd.f32 %v348, %v844
    %846 = vmatmul.bf16.gmra.mxu0 %v705
    %v847 = vpop.f32.mrf.mxu0
    %v848 = vadd.f32 %v353, %v847
    %v849 = vpop.f32.mrf.mxu0
    %v850 = vadd.f32 %v358, %v849
    %851 = vmatmul.bf16.gmra.mxu0 %v708
    %v852 = vpop.f32.mrf.mxu0
    %v853 = vadd.f32 %v363, %v852
    %v854 = vpop.f32.mrf.mxu0
    %v855 = vadd.f32 %v368, %v854
    %856 = vmatmul.bf16.gmra.mxu0 %v711
    %v857 = vpop.f32.mrf.mxu0
    %v858 = vadd.f32 %v373, %v857
    %v859 = vpop.f32.mrf.mxu0
    %v860 = vadd.f32 %v378, %v859
    %861 = vmatmul.bf16.gmra.mxu0 %v714
    %v862 = vpop.f32.mrf.mxu0
    %v863 = vadd.f32 %v383, %v862
    %v864 = vpop.f32.mrf.mxu0
    %v865 = vadd.f32 %v388, %v864
    %866 = vmatmul.bf16.gmra.mxu0 %v717
    %v867 = vpop.f32.mrf.mxu0
    %v868 = vadd.f32 %v393, %v867
    %v869 = vpop.f32.mrf.mxu0
    %v870 = vadd.f32 %v398, %v869
    %871 = vmatmul.bf16.gmra.mxu0 %v720
    %v872 = vpop.f32.mrf.mxu0
    %v873 = vadd.f32 %v403, %v872
    %v874 = vpop.f32.mrf.mxu0
    %v875 = vadd.f32 %v408, %v874
    %876 = vmatmul.bf16.gmra.mxu0 %v723
    %v877 = vpop.f32.mrf.mxu0
    %v878 = vadd.f32 %v413, %v877
    %v879 = vpop.f32.mrf.mxu0
    %v880 = vadd.f32 %v418, %v879
    %881 = vmatmul.bf16.gmra.mxu0 %v726
    %v882 = vpop.f32.mrf.mxu0
    %v883 = vadd.f32 %v423, %v882
    %v884 = vpop.f32.mrf.mxu0
    %v885 = vadd.f32 %v428, %v884
    %886 = vmatmul.bf16.gmra.mxu0 %v729
    %v887 = vpop.f32.mrf.mxu0
    %v888 = vadd.f32 %v433, %v887
    %v889 = vpop.f32.mrf.mxu0
    %v890 = vadd.f32 %v438, %v889
    %891 = vmatmul.bf16.gmra.mxu0 %v732
    %v892 = vpop.f32.mrf.mxu0
    %v893 = vadd.f32 %v443, %v892
    %v894 = vpop.f32.mrf.mxu0
    %v895 = vadd.f32 %v448, %v894
    %896 = vmatmul.bf16.gmra.mxu0 %v735
    %v897 = vpop.f32.mrf.mxu0
    %v898 = vadd.f32 %v453, %v897
    %v899 = vpop.f32.mrf.mxu0
    %v900 = vadd.f32 %v458, %v899
    %901 = vmatmul.bf16.gmra.mxu0 %v738
    %v902 = vpop.f32.mrf.mxu0
    %v903 = vadd.f32 %v463, %v902
    %v904 = vpop.f32.mrf.mxu0
    %v905 = vadd.f32 %v468, %v904
    %906 = vmatmul.bf16.gmra.mxu0 %v741
    %v907 = vpop.f32.mrf.mxu0
    %v908 = vadd.f32 %v473, %v907
    %v909 = vpop.f32.mrf.mxu0
    %v910 = vadd.f32 %v478, %v909
    %911 = vdwg.mxu0
    %v912 = vmax.f32 %v753, 0.0
    %v913 = vmax.f32 %v755, 0.0
    %v914 = vmax.f32 %v758, 0.0
    %v915 = vmax.f32 %v760, 0.0
    %v916 = vmax.f32 %v763, 0.0
    %v917 = vmax.f32 %v765, 0.0
    %v918 = vmax.f32 %v768, 0.0
    %v919 = vmax.f32 %v770, 0.0
    %v920 = vmax.f32 %v773, 0.0
    %v921 = vmax.f32 %v775, 0.0
    %v922 = vmax.f32 %v778, 0.0
    %v923 = vmax.f32 %v780, 0.0
    %v924 = vmax.f32 %v783, 0.0
    %v925 = vmax.f32 %v785, 0.0
    %v926 = vmax.f32 %v788, 0.0
    %v927 = vmax.f32 %v790, 0.0
    %v928 = vmax.f32 %v793, 0.0
    %v929 = vmax.f32 %v795, 0.0
    %v930 = vmax.f32 %v798, 0.0
    %v931 = vmax.f32 %v800, 0.0
    %v932 = vmax.f32 %v803, 0.0
    %v933 = vmax.f32 %v805, 0.0
    %v934 = vmax.f32 %v808, 0.0
    %v935 = vmax.f32 %v810, 0.0
    %v936 = vmax.f32 %v813, 0.0
    %v937 = vmax.f32 %v815, 0.0
    %v938 = vmax.f32 %v818, 0.0
    %v939 = vmax.f32 %v820, 0.0
    %v940 = vmax.f32 %v823, 0.0
    %v941 = vmax.f32 %v825, 0.0
    %v942 = vmax.f32 %v828, 0.0
    %v943 = vmax.f32 %v830, 0.0
    %v944 = vmax.f32 %v833, 0.0
    %v945 = vmax.f32 %v835, 0.0
    %v946 = vmax.f32 %v838, 0.0
    %v947 = vmax.f32 %v840, 0.0
    %v948 = vmax.f32 %v843, 0.0
    %v949 = vmax.f32 %v845, 0.0
    %v950 = vmax.f32 %v848, 0.0
    %v951 = vmax.f32 %v850, 0.0
    %v952 = vmax.f32 %v853, 0.0
    %v953 = vmax.f32 %v855, 0.0
    %v954 = vmax.f32 %v858, 0.0
    %v955 = vmax.f32 %v860, 0.0
    %v956 = vmax.f32 %v863, 0.0
    %v957 = vmax.f32 %v865, 0.0
    %v958 = vmax.f32 %v868, 0.0
    %v959 = vmax.f32 %v870, 0.0
    %v960 = vmax.f32 %v873, 0.0
    %v961 = vmax.f32 %v875, 0.0
    %v962 = vmax.f32 %v878, 0.0
    %v963 = vmax.f32 %v880, 0.0
    %v964 = vmax.f32 %v883, 0.0
    %v965 = vmax.f32 %v885, 0.0
    %v966 = vmax.f32 %v888, 0.0
    %v967 = vmax.f32 %v890, 0.0
    %v968 = vmax.f32 %v893, 0.0
    %v969 = vmax.f32 %v895, 0.0
    %v970 = vmax.f32 %v898, 0.0
    %v971 = vmax.f32 %v900, 0.0
    %v972 = vmax.f32 %v903, 0.0
    %v973 = vmax.f32 %v905, 0.0
    %v974 = vmax.f32 %v908, 0.0
    %v975 = vmax.f32 %v910, 0.0
    %v976 = vld [vmem:[%s3] sm:$0xff]
    %v977 = vld [vmem:[%s3 + $0x8] sm:$0xff]
    %v978 = vld [vmem:[%s3 + $0x10] sm:$0xff]
    %v979 = vld [vmem:[%s3 + $0x18] sm:$0xff]
    %v980 = vld [vmem:[%s3 + $0x20] sm:$0xff]
    %v981 = vld [vmem:[%s3 + $0x28] sm:$0xff]
    %v982 = vld [vmem:[%s3 + $0x30] sm:$0xff]
    %v983 = vld [vmem:[%s3 + $0x38] sm:$0xff]
    %v984 = vld [vmem:[%s3 + $0x40] sm:$0xff]
    %v985 = vld [vmem:[%s3 + $0x48] sm:$0xff]
    %v986 = vld [vmem:[%s3 + $0x50] sm:$0xff]
    %v987 = vld [vmem:[%s3 + $0x58] sm:$0xff]
    %v988 = vld [vmem:[%s3 + $0x60] sm:$0xff]
    %v989 = vld [vmem:[%s3 + $0x68] sm:$0xff]
    %v990 = vld [vmem:[%s3 + $0x70] sm:$0xff]
    %v991 = vld [vmem:[%s3 + $0x78] sm:$0xff]
    %v992 = vld [vmem:[%s3 + $0x80] sm:$0xff]
    %v993 = vld [vmem:[%s3 + $0x88] sm:$0xff]
    %v994 = vld [vmem:[%s3 + $0x90] sm:$0xff]
    %v995 = vld [vmem:[%s3 + $0x98] sm:$0xff]
    %v996 = vld [vmem:[%s3 + $0xa0] sm:$0xff]
    %v997 = vld [vmem:[%s3 + $0xa8] sm:$0xff]
    %v998 = vld [vmem:[%s3 + $0xb0] sm:$0xff]
    %v999 = vld [vmem:[%s3 + $0xb8] sm:$0xff]
    %v1000 = vld [vmem:[%s3 + $0xc0] sm:$0xff]
    %v1001 = vld [vmem:[%s3 + $0xc8] sm:$0xff]
    %v1002 = vld [vmem:[%s3 + $0xd0] sm:$0xff]
    %v1003 = vld [vmem:[%s3 + $0xd8] sm:$0xff]
    %v1004 = vld [vmem:[%s3 + $0xe0] sm:$0xff]
    %v1005 = vld [vmem:[%s3 + $0xe8] sm:$0xff]
    %v1006 = vld [vmem:[%s3 + $0xf0] sm:$0xff]
    %v1007 = vld [vmem:[%s3 + $0xf8] sm:$0xff]
    %v1008 = vld [vmem:[%s3 + $0x100] sm:$0xff]
    %v1009 = vld [vmem:[%s3 + $0x108] sm:$0xff]
    %v1010 = vld [vmem:[%s3 + $0x110] sm:$0xff]
    %v1011 = vld [vmem:[%s3 + $0x118] sm:$0xff]
    %v1012 = vld [vmem:[%s3 + $0x120] sm:$0xff]
    %v1013 = vld [vmem:[%s3 + $0x128] sm:$0xff]
    %v1014 = vld [vmem:[%s3 + $0x130] sm:$0xff]
    %v1015 = vld [vmem:[%s3 + $0x138] sm:$0xff]
    %v1016 = vld [vmem:[%s3 + $0x140] sm:$0xff]
    %v1017 = vld [vmem:[%s3 + $0x148] sm:$0xff]
    %v1018 = vld [vmem:[%s3 + $0x150] sm:$0xff]
    %v1019 = vld [vmem:[%s3 + $0x158] sm:$0xff]
    %v1020 = vld [vmem:[%s3 + $0x160] sm:$0xff]
    %v1021 = vld [vmem:[%s3 + $0x168] sm:$0xff]
    %v1022 = vld [vmem:[%s3 + $0x170] sm:$0xff]
    %v1023 = vld [vmem:[%s3 + $0x178] sm:$0xff]
    %v1024 = vld [vmem:[%s3 + $0x180] sm:$0xff]
    %v1025 = vld [vmem:[%s3 + $0x188] sm:$0xff]
    %v1026 = vld [vmem:[%s3 + $0x190] sm:$0xff]
    %v1027 = vld [vmem:[%s3 + $0x198] sm:$0xff]
    %v1028 = vld [vmem:[%s3 + $0x1a0] sm:$0xff]
    %v1029 = vld [vmem:[%s3 + $0x1a8] sm:$0xff]
    %v1030 = vld [vmem:[%s3 + $0x1b0] sm:$0xff]
    %v1031 = vld [vmem:[%s3 + $0x1b8] sm:$0xff]
    %v1032 = vld [vmem:[%s3 + $0x1c0] sm:$0xff]
    %v1033 = vld [vmem:[%s3 + $0x1c8] sm:$0xff]
    %v1034 = vld [vmem:[%s3 + $0x1d0] sm:$0xff]
    %v1035 = vld [vmem:[%s3 + $0x1d8] sm:$0xff]
    %v1036 = vld [vmem:[%s3 + $0x1e0] sm:$0xff]
    %v1037 = vld [vmem:[%s3 + $0x1e8] sm:$0xff]
    %v1038 = vld [vmem:[%s3 + $0x1f0] sm:$0xff]
    %v1039 = vld [vmem:[%s3 + $0x1f8] sm:$0xff]
    %v1040 = vld [vmem:[%s3 + $0x200] sm:$0xff]
    %v1041 = vld [vmem:[%s3 + $0x208] sm:$0xff]
    %v1042 = vld [vmem:[%s3 + $0x210] sm:$0xff]
    %v1043 = vld [vmem:[%s3 + $0x218] sm:$0xff]
    %v1044 = vld [vmem:[%s3 + $0x220] sm:$0xff]
    %v1045 = vld [vmem:[%s3 + $0x228] sm:$0xff]
    %v1046 = vld [vmem:[%s3 + $0x230] sm:$0xff]
    %v1047 = vld [vmem:[%s3 + $0x238] sm:$0xff]
    %v1048 = vld [vmem:[%s3 + $0x240] sm:$0xff]
    %v1049 = vld [vmem:[%s3 + $0x248] sm:$0xff]
    %v1050 = vld [vmem:[%s3 + $0x250] sm:$0xff]
    %v1051 = vld [vmem:[%s3 + $0x258] sm:$0xff]
    %v1052 = vld [vmem:[%s3 + $0x260] sm:$0xff]
    %v1053 = vld [vmem:[%s3 + $0x268] sm:$0xff]
    %v1054 = vld [vmem:[%s3 + $0x270] sm:$0xff]
    %v1055 = vld [vmem:[%s3 + $0x278] sm:$0xff]
    %v1056 = vld [vmem:[%s3 + $0x280] sm:$0xff]
    %v1057 = vld [vmem:[%s3 + $0x288] sm:$0xff]
    %v1058 = vld [vmem:[%s3 + $0x290] sm:$0xff]
    %v1059 = vld [vmem:[%s3 + $0x298] sm:$0xff]
    %v1060 = vld [vmem:[%s3 + $0x2a0] sm:$0xff]
    %v1061 = vld [vmem:[%s3 + $0x2a8] sm:$0xff]
    %v1062 = vld [vmem:[%s3 + $0x2b0] sm:$0xff]
    %v1063 = vld [vmem:[%s3 + $0x2b8] sm:$0xff]
    %v1064 = vld [vmem:[%s3 + $0x2c0] sm:$0xff]
    %v1065 = vld [vmem:[%s3 + $0x2c8] sm:$0xff]
    %v1066 = vld [vmem:[%s3 + $0x2d0] sm:$0xff]
    %v1067 = vld [vmem:[%s3 + $0x2d8] sm:$0xff]
    %v1068 = vld [vmem:[%s3 + $0x2e0] sm:$0xff]
    %v1069 = vld [vmem:[%s3 + $0x2e8] sm:$0xff]
    %v1070 = vld [vmem:[%s3 + $0x2f0] sm:$0xff]
    %v1071 = vld [vmem:[%s3 + $0x2f8] sm:$0xff]
    %v1072 = vpack.c.bf16 %v913, %v912
    %v1073 = vpack.c.bf16 %v915, %v914
    %v1074 = vpack.c.bf16 %v917, %v916
    %v1075 = vpack.c.bf16 %v919, %v918
    %v1076 = vpack.c.bf16 %v921, %v920
    %v1077 = vpack.c.bf16 %v923, %v922
    %v1078 = vpack.c.bf16 %v925, %v924
    %v1079 = vpack.c.bf16 %v927, %v926
    %v1080 = vpack.c.bf16 %v929, %v928
    %v1081 = vpack.c.bf16 %v931, %v930
    %v1082 = vpack.c.bf16 %v933, %v932
    %v1083 = vpack.c.bf16 %v935, %v934
    %v1084 = vpack.c.bf16 %v937, %v936
    %v1085 = vpack.c.bf16 %v939, %v938
    %v1086 = vpack.c.bf16 %v941, %v940
    %v1087 = vpack.c.bf16 %v943, %v942
    %v1088 = vpack.c.bf16 %v945, %v944
    %v1089 = vpack.c.bf16 %v947, %v946
    %v1090 = vpack.c.bf16 %v949, %v948
    %v1091 = vpack.c.bf16 %v951, %v950
    %v1092 = vpack.c.bf16 %v953, %v952
    %v1093 = vpack.c.bf16 %v955, %v954
    %v1094 = vpack.c.bf16 %v957, %v956
    %v1095 = vpack.c.bf16 %v959, %v958
    %v1096 = vpack.c.bf16 %v961, %v960
    %v1097 = vpack.c.bf16 %v963, %v962
    %v1098 = vpack.c.bf16 %v965, %v964
    %v1099 = vpack.c.bf16 %v967, %v966
    %v1100 = vpack.c.bf16 %v969, %v968
    %v1101 = vpack.c.bf16 %v971, %v970
    %v1102 = vpack.c.bf16 %v973, %v972
    %v1103 = vpack.c.bf16 %v975, %v974
    %v1104 = vld [vmem:[%s4] sm:$0xff]
    %v1105 = vld [vmem:[%s4 + $0x8] sm:$0xff]
    %v1106 = vld [vmem:[%s4 + $0x10] sm:$0xff]
    %v1107 = vld [vmem:[%s4 + $0x18] sm:$0xff]
    %v1108 = vld [vmem:[%s4 + $0x20] sm:$0xff]
    %v1109 = vld [vmem:[%s4 + $0x28] sm:$0xff]
    %v1110 = vld [vmem:[%s4 + $0x30] sm:$0xff]
    %v1111 = vld [vmem:[%s4 + $0x38] sm:$0xff]
    %v1112 = vld [vmem:[%s4 + $0x40] sm:$0xff]
    %v1113 = vld [vmem:[%s4 + $0x48] sm:$0xff]
    %v1114 = vld [vmem:[%s4 + $0x50] sm:$0xff]
    %v1115 = vld [vmem:[%s4 + $0x58] sm:$0xff]
    %v1116 = vld [vmem:[%s4 + $0x60] sm:$0xff]
    %v1117 = vld [vmem:[%s4 + $0x68] sm:$0xff]
    %v1118 = vld [vmem:[%s4 + $0x70] sm:$0xff]
    %v1119 = vld [vmem:[%s4 + $0x78] sm:$0xff]
    %v1120 = vld [vmem:[%s4 + $0x80] sm:$0xff]
    %v1121 = vld [vmem:[%s4 + $0x88] sm:$0xff]
    %v1122 = vld [vmem:[%s4 + $0x90] sm:$0xff]
    %v1123 = vld [vmem:[%s4 + $0x98] sm:$0xff]
    %v1124 = vld [vmem:[%s4 + $0xa0] sm:$0xff]
    %v1125 = vld [vmem:[%s4 + $0xa8] sm:$0xff]
    %v1126 = vld [vmem:[%s4 + $0xb0] sm:$0xff]
    %v1127 = vld [vmem:[%s4 + $0xb8] sm:$0xff]
    %v1128 = vld [vmem:[%s4 + $0xc0] sm:$0xff]
    %v1129 = vld [vmem:[%s4 + $0xc8] sm:$0xff]
    %v1130 = vld [vmem:[%s4 + $0xd0] sm:$0xff]
    %v1131 = vld [vmem:[%s4 + $0xd8] sm:$0xff]
    %v1132 = vld [vmem:[%s4 + $0xe0] sm:$0xff]
    %v1133 = vld [vmem:[%s4 + $0xe8] sm:$0xff]
    %v1134 = vld [vmem:[%s4 + $0xf0] sm:$0xff]
    %v1135 = vld [vmem:[%s4 + $0xf8] sm:$0xff]
    %v1136 = vld [vmem:[%s4 + $0x100] sm:$0xff]
    %v1137 = vld [vmem:[%s4 + $0x108] sm:$0xff]
    %v1138 = vld [vmem:[%s4 + $0x110] sm:$0xff]
    %v1139 = vld [vmem:[%s4 + $0x118] sm:$0xff]
    %v1140 = vld [vmem:[%s4 + $0x120] sm:$0xff]
    %v1141 = vld [vmem:[%s4 + $0x128] sm:$0xff]
    %v1142 = vld [vmem:[%s4 + $0x130] sm:$0xff]
    %v1143 = vld [vmem:[%s4 + $0x138] sm:$0xff]
    %v1144 = vld [vmem:[%s4 + $0x140] sm:$0xff]
    %v1145 = vld [vmem:[%s4 + $0x148] sm:$0xff]
    %v1146 = vld [vmem:[%s4 + $0x150] sm:$0xff]
    %v1147 = vld [vmem:[%s4 + $0x158] sm:$0xff]
    %v1148 = vld [vmem:[%s4 + $0x160] sm:$0xff]
    %v1149 = vld [vmem:[%s4 + $0x168] sm:$0xff]
    %v1150 = vld [vmem:[%s4 + $0x170] sm:$0xff]
    %v1151 = vld [vmem:[%s4 + $0x178] sm:$0xff]
    %1153 = vset.pattern.permute.xlu0 0
    %1154 = vperm.xlu0 %1153, %v1104
    %v1155 = vpop.permute.xlu0 %1154
    %1158 = vset.pattern.permute.xlu0 0
    %1159 = vperm.xlu0 %1158, %v1105
    %v1160 = vpop.permute.xlu0 %1159
    %1163 = vset.pattern.permute.xlu0 0
    %1164 = vperm.xlu0 %1163, %v1106
    %v1165 = vpop.permute.xlu0 %1164
    %1168 = vset.pattern.permute.xlu0 0
    %1169 = vperm.xlu0 %1168, %v1107
    %v1170 = vpop.permute.xlu0 %1169
    %1173 = vset.pattern.permute.xlu0 0
    %1174 = vperm.xlu0 %1173, %v1108
    %v1175 = vpop.permute.xlu0 %1174
    %1178 = vset.pattern.permute.xlu0 0
    %1179 = vperm.xlu0 %1178, %v1109
    %v1180 = vpop.permute.xlu0 %1179
    %1183 = vset.pattern.permute.xlu0 0
    %1184 = vperm.xlu0 %1183, %v1110
    %v1185 = vpop.permute.xlu0 %1184
    %1188 = vset.pattern.permute.xlu0 0
    %1189 = vperm.xlu0 %1188, %v1111
    %v1190 = vpop.permute.xlu0 %1189
    %1193 = vset.pattern.permute.xlu0 0
    %1194 = vperm.xlu0 %1193, %v1112
    %v1195 = vpop.permute.xlu0 %1194
    %1198 = vset.pattern.permute.xlu0 0
    %1199 = vperm.xlu0 %1198, %v1113
    %v1200 = vpop.permute.xlu0 %1199
    %1203 = vset.pattern.permute.xlu0 0
    %1204 = vperm.xlu0 %1203, %v1114
    %v1205 = vpop.permute.xlu0 %1204
    %1208 = vset.pattern.permute.xlu0 0
    %1209 = vperm.xlu0 %1208, %v1115
    %v1210 = vpop.permute.xlu0 %1209
    %1213 = vset.pattern.permute.xlu0 0
    %1214 = vperm.xlu0 %1213, %v1116
    %v1215 = vpop.permute.xlu0 %1214
    %1218 = vset.pattern.permute.xlu0 0
    %1219 = vperm.xlu0 %1218, %v1117
    %v1220 = vpop.permute.xlu0 %1219
    %1223 = vset.pattern.permute.xlu0 0
    %1224 = vperm.xlu0 %1223, %v1118
    %v1225 = vpop.permute.xlu0 %1224
    %1228 = vset.pattern.permute.xlu0 0
    %1229 = vperm.xlu0 %1228, %v1119
    %v1230 = vpop.permute.xlu0 %1229
    %1233 = vset.pattern.permute.xlu0 0
    %1234 = vperm.xlu0 %1233, %v1120
    %v1235 = vpop.permute.xlu0 %1234
    %1238 = vset.pattern.permute.xlu0 0
    %1239 = vperm.xlu0 %1238, %v1121
    %v1240 = vpop.permute.xlu0 %1239
    %1243 = vset.pattern.permute.xlu0 0
    %1244 = vperm.xlu0 %1243, %v1122
    %v1245 = vpop.permute.xlu0 %1244
    %1248 = vset.pattern.permute.xlu0 0
    %1249 = vperm.xlu0 %1248, %v1123
    %v1250 = vpop.permute.xlu0 %1249
    %1253 = vset.pattern.permute.xlu0 0
    %1254 = vperm.xlu0 %1253, %v1124
    %v1255 = vpop.permute.xlu0 %1254
    %1258 = vset.pattern.permute.xlu0 0
    %1259 = vperm.xlu0 %1258, %v1125
    %v1260 = vpop.permute.xlu0 %1259
    %1263 = vset.pattern.permute.xlu0 0
    %1264 = vperm.xlu0 %1263, %v1126
    %v1265 = vpop.permute.xlu0 %1264
    %1268 = vset.pattern.permute.xlu0 0
    %1269 = vperm.xlu0 %1268, %v1127
    %v1270 = vpop.permute.xlu0 %1269
    %1273 = vset.pattern.permute.xlu0 0
    %1274 = vperm.xlu0 %1273, %v1128
    %v1275 = vpop.permute.xlu0 %1274
    %1278 = vset.pattern.permute.xlu0 0
    %1279 = vperm.xlu0 %1278, %v1129
    %v1280 = vpop.permute.xlu0 %1279
    %1283 = vset.pattern.permute.xlu0 0
    %1284 = vperm.xlu0 %1283, %v1130
    %v1285 = vpop.permute.xlu0 %1284
    %1288 = vset.pattern.permute.xlu0 0
    %1289 = vperm.xlu0 %1288, %v1131
    %v1290 = vpop.permute.xlu0 %1289
    %1293 = vset.pattern.permute.xlu0 0
    %1294 = vperm.xlu0 %1293, %v1132
    %v1295 = vpop.permute.xlu0 %1294
    %1298 = vset.pattern.permute.xlu0 0
    %1299 = vperm.xlu0 %1298, %v1133
    %v1300 = vpop.permute.xlu0 %1299
    %1303 = vset.pattern.permute.xlu0 0
    %1304 = vperm.xlu0 %1303, %v1134
    %v1305 = vpop.permute.xlu0 %1304
    %1308 = vset.pattern.permute.xlu0 0
    %1309 = vperm.xlu0 %1308, %v1135
    %v1310 = vpop.permute.xlu0 %1309
    %1313 = vset.pattern.permute.xlu0 0
    %1314 = vperm.xlu0 %1313, %v1136
    %v1315 = vpop.permute.xlu0 %1314
    %1318 = vset.pattern.permute.xlu0 0
    %1319 = vperm.xlu0 %1318, %v1137
    %v1320 = vpop.permute.xlu0 %1319
    %1323 = vset.pattern.permute.xlu0 0
    %1324 = vperm.xlu0 %1323, %v1138
    %v1325 = vpop.permute.xlu0 %1324
    %1328 = vset.pattern.permute.xlu0 0
    %1329 = vperm.xlu0 %1328, %v1139
    %v1330 = vpop.permute.xlu0 %1329
    %1333 = vset.pattern.permute.xlu0 0
    %1334 = vperm.xlu0 %1333, %v1140
    %v1335 = vpop.permute.xlu0 %1334
    %1338 = vset.pattern.permute.xlu0 0
    %1339 = vperm.xlu0 %1338, %v1141
    %v1340 = vpop.permute.xlu0 %1339
    %1343 = vset.pattern.permute.xlu0 0
    %1344 = vperm.xlu0 %1343, %v1142
    %v1345 = vpop.permute.xlu0 %1344
    %1348 = vset.pattern.permute.xlu0 0
    %1349 = vperm.xlu0 %1348, %v1143
    %v1350 = vpop.permute.xlu0 %1349
    %1353 = vset.pattern.permute.xlu0 0
    %1354 = vperm.xlu0 %1353, %v1144
    %v1355 = vpop.permute.xlu0 %1354
    %1358 = vset.pattern.permute.xlu0 0
    %1359 = vperm.xlu0 %1358, %v1145
    %v1360 = vpop.permute.xlu0 %1359
    %1363 = vset.pattern.permute.xlu0 0
    %1364 = vperm.xlu0 %1363, %v1146
    %v1365 = vpop.permute.xlu0 %1364
    %1368 = vset.pattern.permute.xlu0 0
    %1369 = vperm.xlu0 %1368, %v1147
    %v1370 = vpop.permute.xlu0 %1369
    %1373 = vset.pattern.permute.xlu0 0
    %1374 = vperm.xlu0 %1373, %v1148
    %v1375 = vpop.permute.xlu0 %1374
    %1378 = vset.pattern.permute.xlu0 0
    %1379 = vperm.xlu0 %1378, %v1149
    %v1380 = vpop.permute.xlu0 %1379
    %1383 = vset.pattern.permute.xlu0 0
    %1384 = vperm.xlu0 %1383, %v1150
    %v1385 = vpop.permute.xlu0 %1384
    %1388 = vset.pattern.permute.xlu0 0
    %1389 = vperm.xlu0 %1388, %v1151
    %v1390 = vpop.permute.xlu0 %1389
    %v1488 = vunpack.c.l.b16 %v976
    %v1489 = vunpack.c.h.b16 %v976
    %v1490 = vunpack.c.l.b16 %v977
    %v1491 = vunpack.c.h.b16 %v977
    %v1492 = vunpack.c.l.b16 %v978
    %v1493 = vunpack.c.h.b16 %v978
    %v1494 = vunpack.c.l.b16 %v979
    %v1495 = vunpack.c.h.b16 %v979
    %v1496 = vunpack.c.l.b16 %v980
    %v1497 = vunpack.c.h.b16 %v980
    %v1498 = vunpack.c.l.b16 %v981
    %v1499 = vunpack.c.h.b16 %v981
    %v1500 = vunpack.c.l.b16 %v982
    %v1501 = vunpack.c.h.b16 %v982
    %v1502 = vunpack.c.l.b16 %v983
    %v1503 = vunpack.c.h.b16 %v983
    %v1504 = vunpack.c.l.b16 %v984
    %v1505 = vunpack.c.h.b16 %v984
    %v1506 = vunpack.c.l.b16 %v985
    %v1507 = vunpack.c.h.b16 %v985
    %v1508 = vunpack.c.l.b16 %v986
    %v1509 = vunpack.c.h.b16 %v986
    %v1510 = vunpack.c.l.b16 %v987
    %v1511 = vunpack.c.h.b16 %v987
    %v1512 = vunpack.c.l.b16 %v988
    %v1513 = vunpack.c.h.b16 %v988
    %v1514 = vunpack.c.l.b16 %v989
    %v1515 = vunpack.c.h.b16 %v989
    %v1516 = vunpack.c.l.b16 %v990
    %v1517 = vunpack.c.h.b16 %v990
    %v1518 = vunpack.c.l.b16 %v991
    %v1519 = vunpack.c.h.b16 %v991
    %v1520 = vunpack.c.l.b16 %v992
    %v1521 = vunpack.c.h.b16 %v992
    %v1522 = vunpack.c.l.b16 %v993
    %v1523 = vunpack.c.h.b16 %v993
    %v1524 = vunpack.c.l.b16 %v994
    %v1525 = vunpack.c.h.b16 %v994
    %v1526 = vunpack.c.l.b16 %v995
    %v1527 = vunpack.c.h.b16 %v995
    %v1528 = vunpack.c.l.b16 %v996
    %v1529 = vunpack.c.h.b16 %v996
    %v1530 = vunpack.c.l.b16 %v997
    %v1531 = vunpack.c.h.b16 %v997
    %v1532 = vunpack.c.l.b16 %v998
    %v1533 = vunpack.c.h.b16 %v998
    %v1534 = vunpack.c.l.b16 %v999
    %v1535 = vunpack.c.h.b16 %v999
    %v1536 = vunpack.c.l.b16 %v1000
    %v1537 = vunpack.c.h.b16 %v1000
    %v1538 = vunpack.c.l.b16 %v1001
    %v1539 = vunpack.c.h.b16 %v1001
    %v1540 = vunpack.c.l.b16 %v1002
    %v1541 = vunpack.c.h.b16 %v1002
    %v1542 = vunpack.c.l.b16 %v1003
    %v1543 = vunpack.c.h.b16 %v1003
    %v1544 = vunpack.c.l.b16 %v1004
    %v1545 = vunpack.c.h.b16 %v1004
    %v1546 = vunpack.c.l.b16 %v1005
    %v1547 = vunpack.c.h.b16 %v1005
    %v1548 = vunpack.c.l.b16 %v1006
    %v1549 = vunpack.c.h.b16 %v1006
    %v1550 = vunpack.c.l.b16 %v1007
    %v1551 = vunpack.c.h.b16 %v1007
    %v1552 = vunpack.c.l.b16 %v1008
    %v1553 = vunpack.c.h.b16 %v1008
    %v1554 = vunpack.c.l.b16 %v1009
    %v1555 = vunpack.c.h.b16 %v1009
    %v1556 = vunpack.c.l.b16 %v1010
    %v1557 = vunpack.c.h.b16 %v1010
    %v1558 = vunpack.c.l.b16 %v1011
    %v1559 = vunpack.c.h.b16 %v1011
    %v1560 = vunpack.c.l.b16 %v1012
    %v1561 = vunpack.c.h.b16 %v1012
    %v1562 = vunpack.c.l.b16 %v1013
    %v1563 = vunpack.c.h.b16 %v1013
    %v1564 = vunpack.c.l.b16 %v1014
    %v1565 = vunpack.c.h.b16 %v1014
    %v1566 = vunpack.c.l.b16 %v1015
    %v1567 = vunpack.c.h.b16 %v1015
    %v1568 = vunpack.c.l.b16 %v1016
    %v1569 = vunpack.c.h.b16 %v1016
    %v1570 = vunpack.c.l.b16 %v1017
    %v1571 = vunpack.c.h.b16 %v1017
    %v1572 = vunpack.c.l.b16 %v1018
    %v1573 = vunpack.c.h.b16 %v1018
    %v1574 = vunpack.c.l.b16 %v1019
    %v1575 = vunpack.c.h.b16 %v1019
    %v1576 = vunpack.c.l.b16 %v1020
    %v1577 = vunpack.c.h.b16 %v1020
    %v1578 = vunpack.c.l.b16 %v1021
    %v1579 = vunpack.c.h.b16 %v1021
    %v1580 = vunpack.c.l.b16 %v1022
    %v1581 = vunpack.c.h.b16 %v1022
    %v1582 = vunpack.c.l.b16 %v1023
    %v1583 = vunpack.c.h.b16 %v1023
    %v1584 = vunpack.c.l.b16 %v1024
    %v1585 = vunpack.c.h.b16 %v1024
    %v1586 = vunpack.c.l.b16 %v1025
    %v1587 = vunpack.c.h.b16 %v1025
    %v1588 = vunpack.c.l.b16 %v1026
    %v1589 = vunpack.c.h.b16 %v1026
    %v1590 = vunpack.c.l.b16 %v1027
    %v1591 = vunpack.c.h.b16 %v1027
    %v1592 = vunpack.c.l.b16 %v1028
    %v1593 = vunpack.c.h.b16 %v1028
    %v1594 = vunpack.c.l.b16 %v1029
    %v1595 = vunpack.c.h.b16 %v1029
    %v1596 = vunpack.c.l.b16 %v1030
    %v1597 = vunpack.c.h.b16 %v1030
    %v1598 = vunpack.c.l.b16 %v1031
    %v1599 = vunpack.c.h.b16 %v1031
    %v1600 = vunpack.c.l.b16 %v1032
    %v1601 = vunpack.c.h.b16 %v1032
    %v1602 = vunpack.c.l.b16 %v1033
    %v1603 = vunpack.c.h.b16 %v1033
    %v1604 = vunpack.c.l.b16 %v1034
    %v1605 = vunpack.c.h.b16 %v1034
    %v1606 = vunpack.c.l.b16 %v1035
    %v1607 = vunpack.c.h.b16 %v1035
    %v1608 = vunpack.c.l.b16 %v1036
    %v1609 = vunpack.c.h.b16 %v1036
    %v1610 = vunpack.c.l.b16 %v1037
    %v1611 = vunpack.c.h.b16 %v1037
    %v1612 = vunpack.c.l.b16 %v1038
    %v1613 = vunpack.c.h.b16 %v1038
    %v1614 = vunpack.c.l.b16 %v1039
    %v1615 = vunpack.c.h.b16 %v1039
    %v1616 = vunpack.c.l.b16 %v1040
    %v1617 = vunpack.c.h.b16 %v1040
    %v1618 = vunpack.c.l.b16 %v1041
    %v1619 = vunpack.c.h.b16 %v1041
    %v1620 = vunpack.c.l.b16 %v1042
    %v1621 = vunpack.c.h.b16 %v1042
    %v1622 = vunpack.c.l.b16 %v1043
    %v1623 = vunpack.c.h.b16 %v1043
    %v1624 = vunpack.c.l.b16 %v1044
    %v1625 = vunpack.c.h.b16 %v1044
    %v1626 = vunpack.c.l.b16 %v1045
    %v1627 = vunpack.c.h.b16 %v1045
    %v1628 = vunpack.c.l.b16 %v1046
    %v1629 = vunpack.c.h.b16 %v1046
    %v1630 = vunpack.c.l.b16 %v1047
    %v1631 = vunpack.c.h.b16 %v1047
    %v1632 = vunpack.c.l.b16 %v1048
    %v1633 = vunpack.c.h.b16 %v1048
    %v1634 = vunpack.c.l.b16 %v1049
    %v1635 = vunpack.c.h.b16 %v1049
    %v1636 = vunpack.c.l.b16 %v1050
    %v1637 = vunpack.c.h.b16 %v1050
    %v1638 = vunpack.c.l.b16 %v1051
    %v1639 = vunpack.c.h.b16 %v1051
    %v1640 = vunpack.c.l.b16 %v1052
    %v1641 = vunpack.c.h.b16 %v1052
    %v1642 = vunpack.c.l.b16 %v1053
    %v1643 = vunpack.c.h.b16 %v1053
    %v1644 = vunpack.c.l.b16 %v1054
    %v1645 = vunpack.c.h.b16 %v1054
    %v1646 = vunpack.c.l.b16 %v1055
    %v1647 = vunpack.c.h.b16 %v1055
    %v1648 = vunpack.c.l.b16 %v1056
    %v1649 = vunpack.c.h.b16 %v1056
    %v1650 = vunpack.c.l.b16 %v1057
    %v1651 = vunpack.c.h.b16 %v1057
    %v1652 = vunpack.c.l.b16 %v1058
    %v1653 = vunpack.c.h.b16 %v1058
    %v1654 = vunpack.c.l.b16 %v1059
    %v1655 = vunpack.c.h.b16 %v1059
    %v1656 = vunpack.c.l.b16 %v1060
    %v1657 = vunpack.c.h.b16 %v1060
    %v1658 = vunpack.c.l.b16 %v1061
    %v1659 = vunpack.c.h.b16 %v1061
    %v1660 = vunpack.c.l.b16 %v1062
    %v1661 = vunpack.c.h.b16 %v1062
    %v1662 = vunpack.c.l.b16 %v1063
    %v1663 = vunpack.c.h.b16 %v1063
    %v1664 = vunpack.c.l.b16 %v1064
    %v1665 = vunpack.c.h.b16 %v1064
    %v1666 = vunpack.c.l.b16 %v1065
    %v1667 = vunpack.c.h.b16 %v1065
    %v1668 = vunpack.c.l.b16 %v1066
    %v1669 = vunpack.c.h.b16 %v1066
    %v1670 = vunpack.c.l.b16 %v1067
    %v1671 = vunpack.c.h.b16 %v1067
    %v1672 = vunpack.c.l.b16 %v1068
    %v1673 = vunpack.c.h.b16 %v1068
    %v1674 = vunpack.c.l.b16 %v1069
    %v1675 = vunpack.c.h.b16 %v1069
    %v1676 = vunpack.c.l.b16 %v1070
    %v1677 = vunpack.c.h.b16 %v1070
    %v1678 = vunpack.c.l.b16 %v1071
    %v1679 = vunpack.c.h.b16 %v1071
    %v1680 = vpack.c.b16 %v1492, %v1488
    %v1681 = vpack.c.b16 %v1493, %v1489
    %v1682 = vpack.c.b16 %v1494, %v1490
    %v1683 = vpack.c.b16 %v1495, %v1491
    %v1684 = vpack.c.b16 %v1500, %v1496
    %v1685 = vpack.c.b16 %v1501, %v1497
    %v1686 = vpack.c.b16 %v1502, %v1498
    %v1687 = vpack.c.b16 %v1503, %v1499
    %v1688 = vpack.c.b16 %v1508, %v1504
    %v1689 = vpack.c.b16 %v1509, %v1505
    %v1690 = vpack.c.b16 %v1510, %v1506
    %v1691 = vpack.c.b16 %v1511, %v1507
    %v1692 = vpack.c.b16 %v1516, %v1512
    %v1693 = vpack.c.b16 %v1517, %v1513
    %v1694 = vpack.c.b16 %v1518, %v1514
    %v1695 = vpack.c.b16 %v1519, %v1515
    %v1696 = vpack.c.b16 %v1524, %v1520
    %v1697 = vpack.c.b16 %v1525, %v1521
    %v1698 = vpack.c.b16 %v1526, %v1522
    %v1699 = vpack.c.b16 %v1527, %v1523
    %v1700 = vpack.c.b16 %v1532, %v1528
    %v1701 = vpack.c.b16 %v1533, %v1529
    %v1702 = vpack.c.b16 %v1534, %v1530
    %v1703 = vpack.c.b16 %v1535, %v1531
    %v1704 = vpack.c.b16 %v1540, %v1536
    %v1705 = vpack.c.b16 %v1541, %v1537
    %v1706 = vpack.c.b16 %v1542, %v1538
    %v1707 = vpack.c.b16 %v1543, %v1539
    %v1708 = vpack.c.b16 %v1548, %v1544
    %v1709 = vpack.c.b16 %v1549, %v1545
    %v1710 = vpack.c.b16 %v1550, %v1546
    %v1711 = vpack.c.b16 %v1551, %v1547
    %v1712 = vpack.c.b16 %v1556, %v1552
    %v1713 = vpack.c.b16 %v1557, %v1553
    %v1714 = vpack.c.b16 %v1558, %v1554
    %v1715 = vpack.c.b16 %v1559, %v1555
    %v1716 = vpack.c.b16 %v1564, %v1560
    %v1717 = vpack.c.b16 %v1565, %v1561
    %v1718 = vpack.c.b16 %v1566, %v1562
    %v1719 = vpack.c.b16 %v1567, %v1563
    %v1720 = vpack.c.b16 %v1572, %v1568
    %v1721 = vpack.c.b16 %v1573, %v1569
    %v1722 = vpack.c.b16 %v1574, %v1570
    %v1723 = vpack.c.b16 %v1575, %v1571
    %v1724 = vpack.c.b16 %v1580, %v1576
    %v1725 = vpack.c.b16 %v1581, %v1577
    %v1726 = vpack.c.b16 %v1582, %v1578
    %v1727 = vpack.c.b16 %v1583, %v1579
    %v1728 = vpack.c.b16 %v1588, %v1584
    %v1729 = vpack.c.b16 %v1589, %v1585
    %v1730 = vpack.c.b16 %v1590, %v1586
    %v1731 = vpack.c.b16 %v1591, %v1587
    %v1732 = vpack.c.b16 %v1596, %v1592
    %v1733 = vpack.c.b16 %v1597, %v1593
    %v1734 = vpack.c.b16 %v1598, %v1594
    %v1735 = vpack.c.b16 %v1599, %v1595
    %v1736 = vpack.c.b16 %v1604, %v1600
    %v1737 = vpack.c.b16 %v1605, %v1601
    %v1738 = vpack.c.b16 %v1606, %v1602
    %v1739 = vpack.c.b16 %v1607, %v1603
    %v1740 = vpack.c.b16 %v1612, %v1608
    %v1741 = vpack.c.b16 %v1613, %v1609
    %v1742 = vpack.c.b16 %v1614, %v1610
    %v1743 = vpack.c.b16 %v1615, %v1611
    %v1744 = vpack.c.b16 %v1620, %v1616
    %v1745 = vpack.c.b16 %v1621, %v1617
    %v1746 = vpack.c.b16 %v1622, %v1618
    %v1747 = vpack.c.b16 %v1623, %v1619
    %v1748 = vpack.c.b16 %v1628, %v1624
    %v1749 = vpack.c.b16 %v1629, %v1625
    %v1750 = vpack.c.b16 %v1630, %v1626
    %v1751 = vpack.c.b16 %v1631, %v1627
    %v1752 = vpack.c.b16 %v1636, %v1632
    %v1753 = vpack.c.b16 %v1637, %v1633
    %v1754 = vpack.c.b16 %v1638, %v1634
    %v1755 = vpack.c.b16 %v1639, %v1635
    %v1756 = vpack.c.b16 %v1644, %v1640
    %v1757 = vpack.c.b16 %v1645, %v1641
    %v1758 = vpack.c.b16 %v1646, %v1642
    %v1759 = vpack.c.b16 %v1647, %v1643
    %v1760 = vpack.c.b16 %v1652, %v1648
    %v1761 = vpack.c.b16 %v1653, %v1649
    %v1762 = vpack.c.b16 %v1654, %v1650
    %v1763 = vpack.c.b16 %v1655, %v1651
    %v1764 = vpack.c.b16 %v1660, %v1656
    %v1765 = vpack.c.b16 %v1661, %v1657
    %v1766 = vpack.c.b16 %v1662, %v1658
    %v1767 = vpack.c.b16 %v1663, %v1659
    %v1768 = vpack.c.b16 %v1668, %v1664
    %v1769 = vpack.c.b16 %v1669, %v1665
    %v1770 = vpack.c.b16 %v1670, %v1666
    %v1771 = vpack.c.b16 %v1671, %v1667
    %v1772 = vpack.c.b16 %v1676, %v1672
    %v1773 = vpack.c.b16 %v1677, %v1673
    %v1774 = vpack.c.b16 %v1678, %v1674
    %v1775 = vpack.c.b16 %v1679, %v1675
    %1872 = vmatpush.bf16.msra.mxu0 %v1079
    %1873 = vmatpush.bf16.msra.mxu0 %v1078
    %1874 = vmatpush.bf16.msra.mxu0 %v1077
    %1875 = vmatpush.bf16.msra.mxu0 %v1076
    %1876 = vmatpush.bf16.msra.mxu0 %v1075
    %1877 = vmatpush.bf16.msra.mxu0 %v1074
    %1878 = vmatpush.bf16.msra.mxu0 %v1073
    %1879 = vmatpush.bf16.msra.mxu0 %v1072
    %1880 = vmatmul.bf16.gmra.mxu0 %v1680
    %v1881 = vpop.f32.mrf.mxu0
    %v1882 = vadd.f32 %v1155, %v1881
    %v1883 = vpop.f32.mrf.mxu0
    %v1884 = vadd.f32 %v1160, %v1883
    %1885 = vmatmul.bf16.gmra.mxu0 %v1684
    %v1886 = vpop.f32.mrf.mxu0
    %v1887 = vadd.f32 %v1165, %v1886
    %v1888 = vpop.f32.mrf.mxu0
    %v1889 = vadd.f32 %v1170, %v1888
    %1890 = vmatmul.bf16.gmra.mxu0 %v1688
    %v1891 = vpop.f32.mrf.mxu0
    %v1892 = vadd.f32 %v1175, %v1891
    %v1893 = vpop.f32.mrf.mxu0
    %v1894 = vadd.f32 %v1180, %v1893
    %1895 = vmatmul.bf16.gmra.mxu0 %v1692
    %v1896 = vpop.f32.mrf.mxu0
    %v1897 = vadd.f32 %v1185, %v1896
    %v1898 = vpop.f32.mrf.mxu0
    %v1899 = vadd.f32 %v1190, %v1898
    %1900 = vmatmul.bf16.gmra.mxu0 %v1696
    %v1901 = vpop.f32.mrf.mxu0
    %v1902 = vadd.f32 %v1195, %v1901
    %v1903 = vpop.f32.mrf.mxu0
    %v1904 = vadd.f32 %v1200, %v1903
    %1905 = vmatmul.bf16.gmra.mxu0 %v1700
    %v1906 = vpop.f32.mrf.mxu0
    %v1907 = vadd.f32 %v1205, %v1906
    %v1908 = vpop.f32.mrf.mxu0
    %v1909 = vadd.f32 %v1210, %v1908
    %1910 = vmatmul.bf16.gmra.mxu0 %v1704
    %v1911 = vpop.f32.mrf.mxu0
    %v1912 = vadd.f32 %v1215, %v1911
    %v1913 = vpop.f32.mrf.mxu0
    %v1914 = vadd.f32 %v1220, %v1913
    %1915 = vmatmul.bf16.gmra.mxu0 %v1708
    %v1916 = vpop.f32.mrf.mxu0
    %v1917 = vadd.f32 %v1225, %v1916
    %v1918 = vpop.f32.mrf.mxu0
    %v1919 = vadd.f32 %v1230, %v1918
    %1920 = vmatmul.bf16.gmra.mxu0 %v1712
    %v1921 = vpop.f32.mrf.mxu0
    %v1922 = vadd.f32 %v1235, %v1921
    %v1923 = vpop.f32.mrf.mxu0
    %v1924 = vadd.f32 %v1240, %v1923
    %1925 = vmatmul.bf16.gmra.mxu0 %v1716
    %v1926 = vpop.f32.mrf.mxu0
    %v1927 = vadd.f32 %v1245, %v1926
    %v1928 = vpop.f32.mrf.mxu0
    %v1929 = vadd.f32 %v1250, %v1928
    %1930 = vmatmul.bf16.gmra.mxu0 %v1720
    %v1931 = vpop.f32.mrf.mxu0
    %v1932 = vadd.f32 %v1255, %v1931
    %v1933 = vpop.f32.mrf.mxu0
    %v1934 = vadd.f32 %v1260, %v1933
    %1935 = vmatmul.bf16.gmra.mxu0 %v1724
    %v1936 = vpop.f32.mrf.mxu0
    %v1937 = vadd.f32 %v1265, %v1936
    %v1938 = vpop.f32.mrf.mxu0
    %v1939 = vadd.f32 %v1270, %v1938
    %1940 = vmatmul.bf16.gmra.mxu0 %v1728
    %v1941 = vpop.f32.mrf.mxu0
    %v1942 = vadd.f32 %v1275, %v1941
    %v1943 = vpop.f32.mrf.mxu0
    %v1944 = vadd.f32 %v1280, %v1943
    %1945 = vmatmul.bf16.gmra.mxu0 %v1732
    %v1946 = vpop.f32.mrf.mxu0
    %v1947 = vadd.f32 %v1285, %v1946
    %v1948 = vpop.f32.mrf.mxu0
    %v1949 = vadd.f32 %v1290, %v1948
    %1950 = vmatmul.bf16.gmra.mxu0 %v1736
    %v1951 = vpop.f32.mrf.mxu0
    %v1952 = vadd.f32 %v1295, %v1951
    %v1953 = vpop.f32.mrf.mxu0
    %v1954 = vadd.f32 %v1300, %v1953
    %1955 = vmatmul.bf16.gmra.mxu0 %v1740
    %v1956 = vpop.f32.mrf.mxu0
    %v1957 = vadd.f32 %v1305, %v1956
    %v1958 = vpop.f32.mrf.mxu0
    %v1959 = vadd.f32 %v1310, %v1958
    %1960 = vmatmul.bf16.gmra.mxu0 %v1744
    %v1961 = vpop.f32.mrf.mxu0
    %v1962 = vadd.f32 %v1315, %v1961
    %v1963 = vpop.f32.mrf.mxu0
    %v1964 = vadd.f32 %v1320, %v1963
    %1965 = vmatmul.bf16.gmra.mxu0 %v1748
    %v1966 = vpop.f32.mrf.mxu0
    %v1967 = vadd.f32 %v1325, %v1966
    %v1968 = vpop.f32.mrf.mxu0
    %v1969 = vadd.f32 %v1330, %v1968
    %1970 = vmatmul.bf16.gmra.mxu0 %v1752
    %v1971 = vpop.f32.mrf.mxu0
    %v1972 = vadd.f32 %v1335, %v1971
    %v1973 = vpop.f32.mrf.mxu0
    %v1974 = vadd.f32 %v1340, %v1973
    %1975 = vmatmul.bf16.gmra.mxu0 %v1756
    %v1976 = vpop.f32.mrf.mxu0
    %v1977 = vadd.f32 %v1345, %v1976
    %v1978 = vpop.f32.mrf.mxu0
    %v1979 = vadd.f32 %v1350, %v1978
    %1980 = vmatmul.bf16.gmra.mxu0 %v1760
    %v1981 = vpop.f32.mrf.mxu0
    %v1982 = vadd.f32 %v1355, %v1981
    %v1983 = vpop.f32.mrf.mxu0
    %v1984 = vadd.f32 %v1360, %v1983
    %1985 = vmatmul.bf16.gmra.mxu0 %v1764
    %v1986 = vpop.f32.mrf.mxu0
    %v1987 = vadd.f32 %v1365, %v1986
    %v1988 = vpop.f32.mrf.mxu0
    %v1989 = vadd.f32 %v1370, %v1988
    %1990 = vmatmul.bf16.gmra.mxu0 %v1768
    %v1991 = vpop.f32.mrf.mxu0
    %v1992 = vadd.f32 %v1375, %v1991
    %v1993 = vpop.f32.mrf.mxu0
    %v1994 = vadd.f32 %v1380, %v1993
    %1995 = vmatmul.bf16.gmra.mxu0 %v1772
    %v1996 = vpop.f32.mrf.mxu0
    %v1997 = vadd.f32 %v1385, %v1996
    %v1998 = vpop.f32.mrf.mxu0
    %v1999 = vadd.f32 %v1390, %v1998
    %2000 = vdwg.mxu0
    %2001 = vmatpush.bf16.msra.mxu0 %v1087
    %2002 = vmatpush.bf16.msra.mxu0 %v1086
    %2003 = vmatpush.bf16.msra.mxu0 %v1085
    %2004 = vmatpush.bf16.msra.mxu0 %v1084
    %2005 = vmatpush.bf16.msra.mxu0 %v1083
    %2006 = vmatpush.bf16.msra.mxu0 %v1082
    %2007 = vmatpush.bf16.msra.mxu0 %v1081
    %2008 = vmatpush.bf16.msra.mxu0 %v1080
    %2009 = vmatmul.bf16.gmra.mxu0 %v1681
    %v2010 = vpop.f32.mrf.mxu0
    %v2011 = vadd.f32 %v1882, %v2010
    %v2012 = vpop.f32.mrf.mxu0
    %v2013 = vadd.f32 %v1884, %v2012
    %2014 = vmatmul.bf16.gmra.mxu0 %v1685
    %v2015 = vpop.f32.mrf.mxu0
    %v2016 = vadd.f32 %v1887, %v2015
    %v2017 = vpop.f32.mrf.mxu0
    %v2018 = vadd.f32 %v1889, %v2017
    %2019 = vmatmul.bf16.gmra.mxu0 %v1689
    %v2020 = vpop.f32.mrf.mxu0
    %v2021 = vadd.f32 %v1892, %v2020
    %v2022 = vpop.f32.mrf.mxu0
    %v2023 = vadd.f32 %v1894, %v2022
    %2024 = vmatmul.bf16.gmra.mxu0 %v1693
    %v2025 = vpop.f32.mrf.mxu0
    %v2026 = vadd.f32 %v1897, %v2025
    %v2027 = vpop.f32.mrf.mxu0
    %v2028 = vadd.f32 %v1899, %v2027
    %2029 = vmatmul.bf16.gmra.mxu0 %v1697
    %v2030 = vpop.f32.mrf.mxu0
    %v2031 = vadd.f32 %v1902, %v2030
    %v2032 = vpop.f32.mrf.mxu0
    %v2033 = vadd.f32 %v1904, %v2032
    %2034 = vmatmul.bf16.gmra.mxu0 %v1701
    %v2035 = vpop.f32.mrf.mxu0
    %v2036 = vadd.f32 %v1907, %v2035
    %v2037 = vpop.f32.mrf.mxu0
    %v2038 = vadd.f32 %v1909, %v2037
    %2039 = vmatmul.bf16.gmra.mxu0 %v1705
    %v2040 = vpop.f32.mrf.mxu0
    %v2041 = vadd.f32 %v1912, %v2040
    %v2042 = vpop.f32.mrf.mxu0
    %v2043 = vadd.f32 %v1914, %v2042
    %2044 = vmatmul.bf16.gmra.mxu0 %v1709
    %v2045 = vpop.f32.mrf.mxu0
    %v2046 = vadd.f32 %v1917, %v2045
    %v2047 = vpop.f32.mrf.mxu0
    %v2048 = vadd.f32 %v1919, %v2047
    %2049 = vmatmul.bf16.gmra.mxu0 %v1713
    %v2050 = vpop.f32.mrf.mxu0
    %v2051 = vadd.f32 %v1922, %v2050
    %v2052 = vpop.f32.mrf.mxu0
    %v2053 = vadd.f32 %v1924, %v2052
    %2054 = vmatmul.bf16.gmra.mxu0 %v1717
    %v2055 = vpop.f32.mrf.mxu0
    %v2056 = vadd.f32 %v1927, %v2055
    %v2057 = vpop.f32.mrf.mxu0
    %v2058 = vadd.f32 %v1929, %v2057
    %2059 = vmatmul.bf16.gmra.mxu0 %v1721
    %v2060 = vpop.f32.mrf.mxu0
    %v2061 = vadd.f32 %v1932, %v2060
    %v2062 = vpop.f32.mrf.mxu0
    %v2063 = vadd.f32 %v1934, %v2062
    %2064 = vmatmul.bf16.gmra.mxu0 %v1725
    %v2065 = vpop.f32.mrf.mxu0
    %v2066 = vadd.f32 %v1937, %v2065
    %v2067 = vpop.f32.mrf.mxu0
    %v2068 = vadd.f32 %v1939, %v2067
    %2069 = vmatmul.bf16.gmra.mxu0 %v1729
    %v2070 = vpop.f32.mrf.mxu0
    %v2071 = vadd.f32 %v1942, %v2070
    %v2072 = vpop.f32.mrf.mxu0
    %v2073 = vadd.f32 %v1944, %v2072
    %2074 = vmatmul.bf16.gmra.mxu0 %v1733
    %v2075 = vpop.f32.mrf.mxu0
    %v2076 = vadd.f32 %v1947, %v2075
    %v2077 = vpop.f32.mrf.mxu0
    %v2078 = vadd.f32 %v1949, %v2077
    %2079 = vmatmul.bf16.gmra.mxu0 %v1737
    %v2080 = vpop.f32.mrf.mxu0
    %v2081 = vadd.f32 %v1952, %v2080
    %v2082 = vpop.f32.mrf.mxu0
    %v2083 = vadd.f32 %v1954, %v2082
    %2084 = vmatmul.bf16.gmra.mxu0 %v1741
    %v2085 = vpop.f32.mrf.mxu0
    %v2086 = vadd.f32 %v1957, %v2085
    %v2087 = vpop.f32.mrf.mxu0
    %v2088 = vadd.f32 %v1959, %v2087
    %2089 = vmatmul.bf16.gmra.mxu0 %v1745
    %v2090 = vpop.f32.mrf.mxu0
    %v2091 = vadd.f32 %v1962, %v2090
    %v2092 = vpop.f32.mrf.mxu0
    %v2093 = vadd.f32 %v1964, %v2092
    %2094 = vmatmul.bf16.gmra.mxu0 %v1749
    %v2095 = vpop.f32.mrf.mxu0
    %v2096 = vadd.f32 %v1967, %v2095
    %v2097 = vpop.f32.mrf.mxu0
    %v2098 = vadd.f32 %v1969, %v2097
    %2099 = vmatmul.bf16.gmra.mxu0 %v1753
    %v2100 = vpop.f32.mrf.mxu0
    %v2101 = vadd.f32 %v1972, %v2100
    %v2102 = vpop.f32.mrf.mxu0
    %v2103 = vadd.f32 %v1974, %v2102
    %2104 = vmatmul.bf16.gmra.mxu0 %v1757
    %v2105 = vpop.f32.mrf.mxu0
    %v2106 = vadd.f32 %v1977, %v2105
    %v2107 = vpop.f32.mrf.mxu0
    %v2108 = vadd.f32 %v1979, %v2107
    %2109 = vmatmul.bf16.gmra.mxu0 %v1761
    %v2110 = vpop.f32.mrf.mxu0
    %v2111 = vadd.f32 %v1982, %v2110
    %v2112 = vpop.f32.mrf.mxu0
    %v2113 = vadd.f32 %v1984, %v2112
    %2114 = vmatmul.bf16.gmra.mxu0 %v1765
    %v2115 = vpop.f32.mrf.mxu0
    %v2116 = vadd.f32 %v1987, %v2115
    %v2117 = vpop.f32.mrf.mxu0
    %v2118 = vadd.f32 %v1989, %v2117
    %2119 = vmatmul.bf16.gmra.mxu0 %v1769
    %v2120 = vpop.f32.mrf.mxu0
    %v2121 = vadd.f32 %v1992, %v2120
    %v2122 = vpop.f32.mrf.mxu0
    %v2123 = vadd.f32 %v1994, %v2122
    %2124 = vmatmul.bf16.gmra.mxu0 %v1773
    %v2125 = vpop.f32.mrf.mxu0
    %v2126 = vadd.f32 %v1997, %v2125
    %v2127 = vpop.f32.mrf.mxu0
    %v2128 = vadd.f32 %v1999, %v2127
    %2129 = vdwg.mxu0
    %2130 = vmatpush.bf16.msra.mxu0 %v1095
    %2131 = vmatpush.bf16.msra.mxu0 %v1094
    %2132 = vmatpush.bf16.msra.mxu0 %v1093
    %2133 = vmatpush.bf16.msra.mxu0 %v1092
    %2134 = vmatpush.bf16.msra.mxu0 %v1091
    %2135 = vmatpush.bf16.msra.mxu0 %v1090
    %2136 = vmatpush.bf16.msra.mxu0 %v1089
    %2137 = vmatpush.bf16.msra.mxu0 %v1088
    %2138 = vmatmul.bf16.gmra.mxu0 %v1682
    %v2139 = vpop.f32.mrf.mxu0
    %v2140 = vadd.f32 %v2011, %v2139
    %v2141 = vpop.f32.mrf.mxu0
    %v2142 = vadd.f32 %v2013, %v2141
    %2143 = vmatmul.bf16.gmra.mxu0 %v1686
    %v2144 = vpop.f32.mrf.mxu0
    %v2145 = vadd.f32 %v2016, %v2144
    %v2146 = vpop.f32.mrf.mxu0
    %v2147 = vadd.f32 %v2018, %v2146
    %2148 = vmatmul.bf16.gmra.mxu0 %v1690
    %v2149 = vpop.f32.mrf.mxu0
    %v2150 = vadd.f32 %v2021, %v2149
    %v2151 = vpop.f32.mrf.mxu0
    %v2152 = vadd.f32 %v2023, %v2151
    %2153 = vmatmul.bf16.gmra.mxu0 %v1694
    %v2154 = vpop.f32.mrf.mxu0
    %v2155 = vadd.f32 %v2026, %v2154
    %v2156 = vpop.f32.mrf.mxu0
    %v2157 = vadd.f32 %v2028, %v2156
    %2158 = vmatmul.bf16.gmra.mxu0 %v1698
    %v2159 = vpop.f32.mrf.mxu0
    %v2160 = vadd.f32 %v2031, %v2159
    %v2161 = vpop.f32.mrf.mxu0
    %v2162 = vadd.f32 %v2033, %v2161
    %2163 = vmatmul.bf16.gmra.mxu0 %v1702
    %v2164 = vpop.f32.mrf.mxu0
    %v2165 = vadd.f32 %v2036, %v2164
    %v2166 = vpop.f32.mrf.mxu0
    %v2167 = vadd.f32 %v2038, %v2166
    %2168 = vmatmul.bf16.gmra.mxu0 %v1706
    %v2169 = vpop.f32.mrf.mxu0
    %v2170 = vadd.f32 %v2041, %v2169
    %v2171 = vpop.f32.mrf.mxu0
    %v2172 = vadd.f32 %v2043, %v2171
    %2173 = vmatmul.bf16.gmra.mxu0 %v1710
    %v2174 = vpop.f32.mrf.mxu0
    %v2175 = vadd.f32 %v2046, %v2174
    %v2176 = vpop.f32.mrf.mxu0
    %v2177 = vadd.f32 %v2048, %v2176
    %2178 = vmatmul.bf16.gmra.mxu0 %v1714
    %v2179 = vpop.f32.mrf.mxu0
    %v2180 = vadd.f32 %v2051, %v2179
    %v2181 = vpop.f32.mrf.mxu0
    %v2182 = vadd.f32 %v2053, %v2181
    %2183 = vmatmul.bf16.gmra.mxu0 %v1718
    %v2184 = vpop.f32.mrf.mxu0
    %v2185 = vadd.f32 %v2056, %v2184
    %v2186 = vpop.f32.mrf.mxu0
    %v2187 = vadd.f32 %v2058, %v2186
    %2188 = vmatmul.bf16.gmra.mxu0 %v1722
    %v2189 = vpop.f32.mrf.mxu0
    %v2190 = vadd.f32 %v2061, %v2189
    %v2191 = vpop.f32.mrf.mxu0
    %v2192 = vadd.f32 %v2063, %v2191
    %2193 = vmatmul.bf16.gmra.mxu0 %v1726
    %v2194 = vpop.f32.mrf.mxu0
    %v2195 = vadd.f32 %v2066, %v2194
    %v2196 = vpop.f32.mrf.mxu0
    %v2197 = vadd.f32 %v2068, %v2196
    %2198 = vmatmul.bf16.gmra.mxu0 %v1730
    %v2199 = vpop.f32.mrf.mxu0
    %v2200 = vadd.f32 %v2071, %v2199
    %v2201 = vpop.f32.mrf.mxu0
    %v2202 = vadd.f32 %v2073, %v2201
    %2203 = vmatmul.bf16.gmra.mxu0 %v1734
    %v2204 = vpop.f32.mrf.mxu0
    %v2205 = vadd.f32 %v2076, %v2204
    %v2206 = vpop.f32.mrf.mxu0
    %v2207 = vadd.f32 %v2078, %v2206
    %2208 = vmatmul.bf16.gmra.mxu0 %v1738
    %v2209 = vpop.f32.mrf.mxu0
    %v2210 = vadd.f32 %v2081, %v2209
    %v2211 = vpop.f32.mrf.mxu0
    %v2212 = vadd.f32 %v2083, %v2211
    %2213 = vmatmul.bf16.gmra.mxu0 %v1742
    %v2214 = vpop.f32.mrf.mxu0
    %v2215 = vadd.f32 %v2086, %v2214
    %v2216 = vpop.f32.mrf.mxu0
    %v2217 = vadd.f32 %v2088, %v2216
    %2218 = vmatmul.bf16.gmra.mxu0 %v1746
    %v2219 = vpop.f32.mrf.mxu0
    %v2220 = vadd.f32 %v2091, %v2219
    %v2221 = vpop.f32.mrf.mxu0
    %v2222 = vadd.f32 %v2093, %v2221
    %2223 = vmatmul.bf16.gmra.mxu0 %v1750
    %v2224 = vpop.f32.mrf.mxu0
    %v2225 = vadd.f32 %v2096, %v2224
    %v2226 = vpop.f32.mrf.mxu0
    %v2227 = vadd.f32 %v2098, %v2226
    %2228 = vmatmul.bf16.gmra.mxu0 %v1754
    %v2229 = vpop.f32.mrf.mxu0
    %v2230 = vadd.f32 %v2101, %v2229
    %v2231 = vpop.f32.mrf.mxu0
    %v2232 = vadd.f32 %v2103, %v2231
    %2233 = vmatmul.bf16.gmra.mxu0 %v1758
    %v2234 = vpop.f32.mrf.mxu0
    %v2235 = vadd.f32 %v2106, %v2234
    %v2236 = vpop.f32.mrf.mxu0
    %v2237 = vadd.f32 %v2108, %v2236
    %2238 = vmatmul.bf16.gmra.mxu0 %v1762
    %v2239 = vpop.f32.mrf.mxu0
    %v2240 = vadd.f32 %v2111, %v2239
    %v2241 = vpop.f32.mrf.mxu0
    %v2242 = vadd.f32 %v2113, %v2241
    %2243 = vmatmul.bf16.gmra.mxu0 %v1766
    %v2244 = vpop.f32.mrf.mxu0
    %v2245 = vadd.f32 %v2116, %v2244
    %v2246 = vpop.f32.mrf.mxu0
    %v2247 = vadd.f32 %v2118, %v2246
    %2248 = vmatmul.bf16.gmra.mxu0 %v1770
    %v2249 = vpop.f32.mrf.mxu0
    %v2250 = vadd.f32 %v2121, %v2249
    %v2251 = vpop.f32.mrf.mxu0
    %v2252 = vadd.f32 %v2123, %v2251
    %2253 = vmatmul.bf16.gmra.mxu0 %v1774
    %v2254 = vpop.f32.mrf.mxu0
    %v2255 = vadd.f32 %v2126, %v2254
    %v2256 = vpop.f32.mrf.mxu0
    %v2257 = vadd.f32 %v2128, %v2256
    %2258 = vdwg.mxu0
    %2259 = vmatpush.bf16.msra.mxu0 %v1103
    %2260 = vmatpush.bf16.msra.mxu0 %v1102
    %2261 = vmatpush.bf16.msra.mxu0 %v1101
    %2262 = vmatpush.bf16.msra.mxu0 %v1100
    %2263 = vmatpush.bf16.msra.mxu0 %v1099
    %2264 = vmatpush.bf16.msra.mxu0 %v1098
    %2265 = vmatpush.bf16.msra.mxu0 %v1097
    %2266 = vmatpush.bf16.msra.mxu0 %v1096
    %2267 = vmatmul.bf16.gmra.mxu0 %v1683
    %v2268 = vpop.f32.mrf.mxu0
    %v2269 = vadd.f32 %v2140, %v2268
    %v2270 = vpop.f32.mrf.mxu0
    %v2271 = vadd.f32 %v2142, %v2270
    %2272 = vmatmul.bf16.gmra.mxu0 %v1687
    %v2273 = vpop.f32.mrf.mxu0
    %v2274 = vadd.f32 %v2145, %v2273
    %v2275 = vpop.f32.mrf.mxu0
    %v2276 = vadd.f32 %v2147, %v2275
    %2277 = vmatmul.bf16.gmra.mxu0 %v1691
    %v2278 = vpop.f32.mrf.mxu0
    %v2279 = vadd.f32 %v2150, %v2278
    %v2280 = vpop.f32.mrf.mxu0
    %v2281 = vadd.f32 %v2152, %v2280
    %2282 = vmatmul.bf16.gmra.mxu0 %v1695
    %v2283 = vpop.f32.mrf.mxu0
    %v2284 = vadd.f32 %v2155, %v2283
    %v2285 = vpop.f32.mrf.mxu0
    %v2286 = vadd.f32 %v2157, %v2285
    %2287 = vmatmul.bf16.gmra.mxu0 %v1699
    %v2288 = vpop.f32.mrf.mxu0
    %v2289 = vadd.f32 %v2160, %v2288
    %v2290 = vpop.f32.mrf.mxu0
    %v2291 = vadd.f32 %v2162, %v2290
    %2292 = vmatmul.bf16.gmra.mxu0 %v1703
    %v2293 = vpop.f32.mrf.mxu0
    %v2294 = vadd.f32 %v2165, %v2293
    %v2295 = vpop.f32.mrf.mxu0
    %v2296 = vadd.f32 %v2167, %v2295
    %2297 = vmatmul.bf16.gmra.mxu0 %v1707
    %v2298 = vpop.f32.mrf.mxu0
    %v2299 = vadd.f32 %v2170, %v2298
    %v2300 = vpop.f32.mrf.mxu0
    %v2301 = vadd.f32 %v2172, %v2300
    %2302 = vmatmul.bf16.gmra.mxu0 %v1711
    %v2303 = vpop.f32.mrf.mxu0
    %v2304 = vadd.f32 %v2175, %v2303
    %v2305 = vpop.f32.mrf.mxu0
    %v2306 = vadd.f32 %v2177, %v2305
    %2307 = vmatmul.bf16.gmra.mxu0 %v1715
    %v2308 = vpop.f32.mrf.mxu0
    %v2309 = vadd.f32 %v2180, %v2308
    %v2310 = vpop.f32.mrf.mxu0
    %v2311 = vadd.f32 %v2182, %v2310
    %2312 = vmatmul.bf16.gmra.mxu0 %v1719
    %v2313 = vpop.f32.mrf.mxu0
    %v2314 = vadd.f32 %v2185, %v2313
    %v2315 = vpop.f32.mrf.mxu0
    %v2316 = vadd.f32 %v2187, %v2315
    %2317 = vmatmul.bf16.gmra.mxu0 %v1723
    %v2318 = vpop.f32.mrf.mxu0
    %v2319 = vadd.f32 %v2190, %v2318
    %v2320 = vpop.f32.mrf.mxu0
    %v2321 = vadd.f32 %v2192, %v2320
    %2322 = vmatmul.bf16.gmra.mxu0 %v1727
    %v2323 = vpop.f32.mrf.mxu0
    %v2324 = vadd.f32 %v2195, %v2323
    %v2325 = vpop.f32.mrf.mxu0
    %v2326 = vadd.f32 %v2197, %v2325
    %2327 = vmatmul.bf16.gmra.mxu0 %v1731
    %v2328 = vpop.f32.mrf.mxu0
    %v2329 = vadd.f32 %v2200, %v2328
    %v2330 = vpop.f32.mrf.mxu0
    %v2331 = vadd.f32 %v2202, %v2330
    %2332 = vmatmul.bf16.gmra.mxu0 %v1735
    %v2333 = vpop.f32.mrf.mxu0
    %v2334 = vadd.f32 %v2205, %v2333
    %v2335 = vpop.f32.mrf.mxu0
    %v2336 = vadd.f32 %v2207, %v2335
    %2337 = vmatmul.bf16.gmra.mxu0 %v1739
    %v2338 = vpop.f32.mrf.mxu0
    %v2339 = vadd.f32 %v2210, %v2338
    %v2340 = vpop.f32.mrf.mxu0
    %v2341 = vadd.f32 %v2212, %v2340
    %2342 = vmatmul.bf16.gmra.mxu0 %v1743
    %v2343 = vpop.f32.mrf.mxu0
    %v2344 = vadd.f32 %v2215, %v2343
    %v2345 = vpop.f32.mrf.mxu0
    %v2346 = vadd.f32 %v2217, %v2345
    %2347 = vmatmul.bf16.gmra.mxu0 %v1747
    %v2348 = vpop.f32.mrf.mxu0
    %v2349 = vadd.f32 %v2220, %v2348
    %v2350 = vpop.f32.mrf.mxu0
    %v2351 = vadd.f32 %v2222, %v2350
    %2352 = vmatmul.bf16.gmra.mxu0 %v1751
    %v2353 = vpop.f32.mrf.mxu0
    %v2354 = vadd.f32 %v2225, %v2353
    %v2355 = vpop.f32.mrf.mxu0
    %v2356 = vadd.f32 %v2227, %v2355
    %2357 = vmatmul.bf16.gmra.mxu0 %v1755
    %v2358 = vpop.f32.mrf.mxu0
    %v2359 = vadd.f32 %v2230, %v2358
    %v2360 = vpop.f32.mrf.mxu0
    %v2361 = vadd.f32 %v2232, %v2360
    %2362 = vmatmul.bf16.gmra.mxu0 %v1759
    %v2363 = vpop.f32.mrf.mxu0
    %v2364 = vadd.f32 %v2235, %v2363
    %v2365 = vpop.f32.mrf.mxu0
    %v2366 = vadd.f32 %v2237, %v2365
    %2367 = vmatmul.bf16.gmra.mxu0 %v1763
    %v2368 = vpop.f32.mrf.mxu0
    %v2369 = vadd.f32 %v2240, %v2368
    %v2370 = vpop.f32.mrf.mxu0
    %v2371 = vadd.f32 %v2242, %v2370
    %2372 = vmatmul.bf16.gmra.mxu0 %v1767
    %v2373 = vpop.f32.mrf.mxu0
    %v2374 = vadd.f32 %v2245, %v2373
    %v2375 = vpop.f32.mrf.mxu0
    %v2376 = vadd.f32 %v2247, %v2375
    %2377 = vmatmul.bf16.gmra.mxu0 %v1771
    %v2378 = vpop.f32.mrf.mxu0
    %v2379 = vadd.f32 %v2250, %v2378
    %v2380 = vpop.f32.mrf.mxu0
    %v2381 = vadd.f32 %v2252, %v2380
    %2382 = vmatmul.bf16.gmra.mxu0 %v1775
    %v2383 = vpop.f32.mrf.mxu0
    %v2384 = vadd.f32 %v2255, %v2383
    %v2385 = vpop.f32.mrf.mxu0
    %v2386 = vadd.f32 %v2257, %v2385
    %2387 = vdwg.mxu0
    %v2388 = vmax.f32 %v2269, 0.0
    %v2389 = vmax.f32 %v2271, 0.0
    %v2390 = vmax.f32 %v2274, 0.0
    %v2391 = vmax.f32 %v2276, 0.0
    %v2392 = vmax.f32 %v2279, 0.0
    %v2393 = vmax.f32 %v2281, 0.0
    %v2394 = vmax.f32 %v2284, 0.0
    %v2395 = vmax.f32 %v2286, 0.0
    %v2396 = vmax.f32 %v2289, 0.0
    %v2397 = vmax.f32 %v2291, 0.0
    %v2398 = vmax.f32 %v2294, 0.0
    %v2399 = vmax.f32 %v2296, 0.0
    %v2400 = vmax.f32 %v2299, 0.0
    %v2401 = vmax.f32 %v2301, 0.0
    %v2402 = vmax.f32 %v2304, 0.0
    %v2403 = vmax.f32 %v2306, 0.0
    %v2404 = vmax.f32 %v2309, 0.0
    %v2405 = vmax.f32 %v2311, 0.0
    %v2406 = vmax.f32 %v2314, 0.0
    %v2407 = vmax.f32 %v2316, 0.0
    %v2408 = vmax.f32 %v2319, 0.0
    %v2409 = vmax.f32 %v2321, 0.0
    %v2410 = vmax.f32 %v2324, 0.0
    %v2411 = vmax.f32 %v2326, 0.0
    %v2412 = vmax.f32 %v2329, 0.0
    %v2413 = vmax.f32 %v2331, 0.0
    %v2414 = vmax.f32 %v2334, 0.0
    %v2415 = vmax.f32 %v2336, 0.0
    %v2416 = vmax.f32 %v2339, 0.0
    %v2417 = vmax.f32 %v2341, 0.0
    %v2418 = vmax.f32 %v2344, 0.0
    %v2419 = vmax.f32 %v2346, 0.0
    %v2420 = vmax.f32 %v2349, 0.0
    %v2421 = vmax.f32 %v2351, 0.0
    %v2422 = vmax.f32 %v2354, 0.0
    %v2423 = vmax.f32 %v2356, 0.0
    %v2424 = vmax.f32 %v2359, 0.0
    %v2425 = vmax.f32 %v2361, 0.0
    %v2426 = vmax.f32 %v2364, 0.0
    %v2427 = vmax.f32 %v2366, 0.0
    %v2428 = vmax.f32 %v2369, 0.0
    %v2429 = vmax.f32 %v2371, 0.0
    %v2430 = vmax.f32 %v2374, 0.0
    %v2431 = vmax.f32 %v2376, 0.0
    %v2432 = vmax.f32 %v2379, 0.0
    %v2433 = vmax.f32 %v2381, 0.0
    %v2434 = vmax.f32 %v2384, 0.0
    %v2435 = vmax.f32 %v2386, 0.0
    %v2436 = vld [vmem:[%s5] sm:$0x7]
    %v2437 = vld [vmem:[#allocation2] sm:$0x1]
    %2439 = vset.pattern.permute.xlu0 0
    %2440 = vperm.xlu0 %2439, %v2437
    %v2441 = vpop.permute.xlu0 %2440
    %v2443 = vperm.slane %v2441, 0
    %v2445 = vperm.slane %v2436, 0
    %v2446 = vperm.slane %v2436, 1
    %v2447 = vperm.slane %v2436, 2
    %2451 = vmatpush.msra.mxu0 %v2403
    %2452 = vmatpush.msra.mxu0 %v2402
    %2453 = vmatpush.msra.mxu0 %v2401
    %2454 = vmatpush.msra.mxu0 %v2400
    %2455 = vmatpush.msra.mxu0 %v2399
    %2456 = vmatpush.msra.mxu0 %v2398
    %2457 = vmatpush.msra.mxu0 %v2397
    %2458 = vmatpush.msra.mxu0 %v2396
    %2459 = vmatpush.msra.mxu0 %v2395
    %2460 = vmatpush.msra.mxu0 %v2394
    %2461 = vmatpush.msra.mxu0 %v2393
    %2462 = vmatpush.msra.mxu0 %v2392
    %2463 = vmatpush.msra.mxu0 %v2391
    %2464 = vmatpush.msra.mxu0 %v2390
    %2465 = vmatpush.msra.mxu0 %v2389
    %2466 = vmatpush.msra.mxu0 %v2388
    %2467 = vmatmul.f32.gmra.mxu0 %v2445
    %v2468 = vpop.f32.mrf.mxu0
    %v2469 = vadd.f32 %v2443, %v2468
    %2470 = vdwg.mxu0
    %2471 = vmatpush.msra.mxu0 %v2419
    %2472 = vmatpush.msra.mxu0 %v2418
    %2473 = vmatpush.msra.mxu0 %v2417
    %2474 = vmatpush.msra.mxu0 %v2416
    %2475 = vmatpush.msra.mxu0 %v2415
    %2476 = vmatpush.msra.mxu0 %v2414
    %2477 = vmatpush.msra.mxu0 %v2413
    %2478 = vmatpush.msra.mxu0 %v2412
    %2479 = vmatpush.msra.mxu0 %v2411
    %2480 = vmatpush.msra.mxu0 %v2410
    %2481 = vmatpush.msra.mxu0 %v2409
    %2482 = vmatpush.msra.mxu0 %v2408
    %2483 = vmatpush.msra.mxu0 %v2407
    %2484 = vmatpush.msra.mxu0 %v2406
    %2485 = vmatpush.msra.mxu0 %v2405
    %2486 = vmatpush.msra.mxu0 %v2404
    %2487 = vmatmul.f32.gmra.mxu0 %v2446
    %v2488 = vpop.f32.mrf.mxu0
    %v2489 = vadd.f32 %v2469, %v2488
    %2490 = vdwg.mxu0
    %2491 = vmatpush.msra.mxu0 %v2435
    %2492 = vmatpush.msra.mxu0 %v2434
    %2493 = vmatpush.msra.mxu0 %v2433
    %2494 = vmatpush.msra.mxu0 %v2432
    %2495 = vmatpush.msra.mxu0 %v2431
    %2496 = vmatpush.msra.mxu0 %v2430
    %2497 = vmatpush.msra.mxu0 %v2429
    %2498 = vmatpush.msra.mxu0 %v2428
    %2499 = vmatpush.msra.mxu0 %v2427
    %2500 = vmatpush.msra.mxu0 %v2426
    %2501 = vmatpush.msra.mxu0 %v2425
    %2502 = vmatpush.msra.mxu0 %v2424
    %2503 = vmatpush.msra.mxu0 %v2423
    %2504 = vmatpush.msra.mxu0 %v2422
    %2505 = vmatpush.msra.mxu0 %v2421
    %2506 = vmatpush.msra.mxu0 %v2420
    %2507 = vmatmul.f32.gmra.mxu0 %v2447
    %v2508 = vpop.f32.mrf.mxu0
    %v2509 = vadd.f32 %v2489, %v2508
    %2510 = vdwg.mxu0
    %2511 = vst [vmem:[#allocation3] sm:$0x1] %v2509
    // Predicated region
    $region30: #{tpu_custom_call.1} parent=1 // pred_check
      _
    $region31: #{tpu_custom_call.1} parent=1 // pred_check_branch
      %2513 = sbr.rel (0) target = $region33
    $region32: #{tpu_custom_call.1} parent=1 // pred_region
      %2515 = vsyncadd [#allocation4], 0
      %s2517 = sshll.u32 [#allocation3], 4
      %s2518 = int_to_ptr.vmem [resolvable:$true] %s2517
      %s2519 = sshll.u32 %s7, 4
      %s2520 = int_to_ptr.hbm [resolvable:$true] %s2519
      %2522 = dma.vmem_to_hbm [thread:$0]  %s2518, 16, %s2520, [#allocation4]
    $region33: #{tpu_custom_call.1} parent=1 // pred_fallthru
      _
    // Predicated region
    $region34: #{tpu_custom_call.1} parent=1 // pred_check
      _
    $region35: #{tpu_custom_call.1} parent=1 // pred_check_branch
      %2524 = sbr.rel (0) target = $region37
    $region36: #{tpu_custom_call.1} parent=1 // pred_region
      %2526 = dma.done [#allocation4], 16
    $region37: #{tpu_custom_call.1} parent=1 // pred_fallthru
      _
    %2527 = vsyncpa [#allocation4], 1

</llo_original>
